<compile_context>
chip_gen: v5e
topology: v5e:2x2
jax: 0.10.0
libtpu: 0.0.40
codegen_flags: <defaults>
</compile_context>

<pallas_src>
import jax
import jax.numpy as jnp
from jax import lax
from jax.experimental import pallas as pl
from jax.experimental.pallas import tpu as pltpu


def _round_up(x, m):
    return (x + m - 1) // m * m


def _make_kernel(TS, Bp, H, S_real, S_pad):
    """Builds the kernel with static tile/shape parameters closed over."""

    def kernel(x_ref, h0_ref, c0_ref,
               wih0_ref, whh0_ref, b0_ref,
               wcat1_ref, b1_ref,
               ws_ref, bs_ref,
               out_ref, hn_ref, cn_ref,
               xproj_ref, h1hist_ref, hstate_ref, cstate_ref):
        pid = pl.program_id(0)
        n_tiles = pl.num_programs(0)

        # Initialize the carried (persistent-across-grid) state on the first tile.
        @pl.when(pid == 0)
        def _():
            hstate_ref[...] = h0_ref[...]
            cstate_ref[...] = c0_ref[...]

        # ---- Hoisted layer-0 input projection: one batched bf16 MXU matmul per tile,
        #      bias folded in once (instead of a (B,V)@(V,4H) sliver per timestep). ----
        xproj_ref[...] = (
            jnp.dot(x_ref[...], wih0_ref[...], preferred_element_type=jnp.float32)
            + b0_ref[...])

        # Weights stay live for the whole tile; bias broadcast hoisted out of the loop.
        whh0 = whh0_ref[...]                                   # (H, 4H)   bf16
        wcat1 = wcat1_ref[...]                                 # (2H, 4H)  bf16
        b1 = jnp.broadcast_to(b1_ref[...], (Bp, 4 * H))        # (Bp, 4H)  f32

        def gates_split(g):
            # PyTorch gate order: i, f, g, o
            i = jax.nn.sigmoid(g[:, 0 * H:1 * H])
            f = jax.nn.sigmoid(g[:, 1 * H:2 * H])
            gg = jnp.tanh(g[:, 2 * H:3 * H])
            o = jax.nn.sigmoid(g[:, 3 * H:4 * H])
            return i, f, gg, o

        def step(t, carry):
            h0, c0, h1, c1 = carry                              # all (Bp, H) f32
            row = pl.multiple_of(t * Bp, Bp)

            # Layer 0: only the recurrent matmul is left on the serial path.
            g0 = xproj_ref[pl.ds(row, Bp), :] + jnp.dot(
                h0.astype(jnp.bfloat16), whh0, preferred_element_type=jnp.float32)
            i0, f0, gg0, o0 = gates_split(g0)
            c0n = f0 * c0 + i0 * gg0
            h0n = o0 * jnp.tanh(c0n)

            # Layer 1: fused input+recurrent matmul: [h0n, h1] @ [W_ih1; W_hh1].
            xin1 = jnp.concatenate([h0n, h1], axis=-1).astype(jnp.bfloat16)
            g1 = jnp.dot(xin1, wcat1, preferred_element_type=jnp.float32) + b1
            i1, f1, gg1, o1 = gates_split(g1)
            c1n = f1 * c1 + i1 * gg1
            h1n = o1 * jnp.tanh(c1n)

            # Stash layer-1 hidden for the deferred (batched) output projection.
            h1hist_ref[pl.ds(row, Bp), :] = h1n

            if S_pad != S_real:  # static branch: freeze state on padded timesteps
                keep = (pid * TS + t) < S_real
                h0n = jnp.where(keep, h0n, h0)
                c0n = jnp.where(keep, c0n, c0)
                h1n = jnp.where(keep, h1n, h1)
                c1n = jnp.where(keep, c1n, c1)
            return h0n, c0n, h1n, c1n

        init = (hstate_ref[0], cstate_ref[0], hstate_ref[1], cstate_ref[1])
        unroll = True if TS <= 32 else 8
        h0f, c0f, h1f, c1f = lax.fori_loop(0, TS, step, init, unroll=unroll)

        hstate_ref[0] = h0f
        hstate_ref[1] = h1f
        cstate_ref[0] = c0f
        cstate_ref[1] = c1f

        # ---- Deferred W_s projection: one batched, lane-dense MXU matmul per tile. ----
        out_ref[...] = (
            jnp.dot(h1hist_ref[...].astype(jnp.bfloat16), ws_ref[...],
                    preferred_element_type=jnp.float32)
            + bs_ref[...])

        @pl.when(pid == n_tiles - 1)
        def _():
            hn_ref[...] = hstate_ref[...]
            cn_ref[...] = cstate_ref[...]

    return kernel


def decoder_forward(input_seq, decoder_hidden, params, *, seq_tile=128):
    """input_seq: (B, S, V) batch_first; decoder_hidden: (h0, c0) each (2, B, H).
       Returns (output (S, B, V) raw W_s logits, (h_n, c_n))."""
    h0, c0 = decoder_hidden
    B, S, V = input_seq.shape
    L, _, H = h0.shape
    assert L == 2, "kernel implements the module default n_layers=2"

    f32, bf16 = jnp.float32, jnp.bfloat16
    Bp = _round_up(B, 8)          # full f32 sublanes (no masked partial rows)
    Vp = _round_up(V, 128)        # lane-dense input / output (no masked vst)
    TS = S if S <= seq_tile else seq_tile
    S_pad = _round_up(S, TS)
    n_tiles = S_pad // TS
    row_block = TS * Bp

    # Input: batch_first -> time-major, pad, flatten to a 2-D (rows, lanes) slab.
    x = jnp.transpose(input_seq, (1, 0, 2)).astype(f32)
    x = jnp.pad(x, ((0, S_pad - S), (0, Bp - B), (0, Vp - V)))
    x = x.reshape(S_pad * Bp, Vp).astype(bf16)

    h0p = jnp.pad(h0.astype(f32), ((0, 0), (0, Bp - B), (0, 0)))
    c0p = jnp.pad(c0.astype(f32), ((0, 0), (0, Bp - B), (0, 0)))

    # Weights pre-transposed; bf16 MXU operands; biases folded and kept f32.
    wih0 = jnp.pad(params["w_ih_l0"].T.astype(f32), ((0, Vp - V), (0, 0))).astype(bf16)
    whh0 = params["w_hh_l0"].T.astype(bf16)
    b0 = (params["b_ih_l0"] + params["b_hh_l0"]).astype(f32)[None, :]
    wcat1 = jnp.concatenate(
        [params["w_ih_l1"].T, params["w_hh_l1"].T], axis=0).astype(bf16)      # (2H, 4H)
    b1 = (params["b_ih_l1"] + params["b_hh_l1"]).astype(f32)[None, :]
    ws = jnp.pad(params["W_s"].T.astype(f32), ((0, 0), (0, Vp - V))).astype(bf16)
    bs = jnp.pad(params["b_s"].astype(f32), (0, Vp - V))[None, :]

    kernel = _make_kernel(TS, Bp, H, S, S_pad)

    grid_spec = pltpu.PrefetchScalarGridSpec(
        num_scalar_prefetch=0,
        grid=(n_tiles,),
        in_specs=[
            pl.BlockSpec((row_block, Vp), lambda s: (s, 0)),    # x, tiled over S
            pl.BlockSpec((L, Bp, H), lambda s: (0, 0, 0)),      # h0 (resident)
            pl.BlockSpec((L, Bp, H), lambda s: (0, 0, 0)),      # c0 (resident)
            pl.BlockSpec((Vp, 4 * H), lambda s: (0, 0)),        # W_ih layer 0
            pl.BlockSpec((H, 4 * H), lambda s: (0, 0)),         # W_hh layer 0
            pl.BlockSpec((1, 4 * H), lambda s: (0, 0)),         # bias layer 0
            pl.BlockSpec((2 * H, 4 * H), lambda s: (0, 0)),     # [W_ih; W_hh] layer 1
            pl.BlockSpec((1, 4 * H), lambda s: (0, 0)),         # bias layer 1
            pl.BlockSpec((H, Vp), lambda s: (0, 0)),            # W_s
            pl.BlockSpec((1, Vp), lambda s: (0, 0)),            # b_s
        ],
        out_specs=(
            pl.BlockSpec((row_block, Vp), lambda s: (s, 0)),    # logits, tiled over S
            pl.BlockSpec((L, Bp, H), lambda s: (0, 0, 0)),      # h_n
            pl.BlockSpec((L, Bp, H), lambda s: (0, 0, 0)),      # c_n
        ),
        scratch_shapes=[
            pltpu.VMEM((row_block, 4 * H), f32),   # hoisted layer-0 input projection
            pltpu.VMEM((row_block, H), f32),       # layer-1 hidden history (deferred W_s)
            pltpu.VMEM((L, Bp, H), f32),           # carried hidden state across tiles
            pltpu.VMEM((L, Bp, H), f32),           # carried cell state across tiles
        ],
    )

    out_flat, hn, cn = pl.pallas_call(
        kernel,
        out_shape=(
            jax.ShapeDtypeStruct((S_pad * Bp, Vp), f32),
            jax.ShapeDtypeStruct((L, Bp, H), f32),
            jax.ShapeDtypeStruct((L, Bp, H), f32),
        ),
        grid_spec=grid_spec,
        compiler_params=pltpu.CompilerParams(
            dimension_semantics=("arbitrary",)),   # serial recurrence over S-tiles
    )(x, h0p, c0p, wih0, whh0, b0, wcat1, b1, ws, bs)

    out = out_flat.reshape(S_pad, Bp, Vp)[:S, :B, :V]
    return out, (hn[:, :B, :], cn[:, :B, :])


def reference_forward(input_seq, decoder_hidden, params):
    """Pure-JAX f32 reference matching the PyTorch module (LSTM -> transpose -> W_s)."""
    h0c, c0c = decoder_hidden
    B, S, V = input_seq.shape
    H = h0c.shape[2]
    h = [h0c[0], h0c[1]]
    c = [c0c[0], c0c[1]]

    def cell(x, h, c, wih, whh, bih, bhh):
        g = x @ wih.T + bih + h @ whh.T + bhh
        i = jax.nn.sigmoid(g[:, :H])
        f = jax.nn.sigmoid(g[:, H:2 * H])
        gg = jnp.tanh(g[:, 2 * H:3 * H])
        o = jax.nn.sigmoid(g[:, 3 * H:])
        cn = f * c + i * gg
        return o * jnp.tanh(cn), cn

    outs = []
    for t in range(S):
        x_t = input_seq[:, t, :]
        h[0], c[0] = cell(x_t, h[0], c[0], params["w_ih_l0"], params["w_hh_l0"],
                          params["b_ih_l0"], params["b_hh_l0"])
        h[1], c[1] = cell(h[0], h[1], c[1], params["w_ih_l1"], params["w_hh_l1"],
                          params["b_ih_l1"], params["b_hh_l1"])
        outs.append(h[1] @ params["W_s"].T + params["b_s"])   # raw logits, no softmax
    return jnp.stack(outs, 0), (jnp.stack(h, 0), jnp.stack(c, 0))


if __name__ == "__main__":
    B, S, V, H, L = 2, 8, 16, 32, 2

    key = jax.random.PRNGKey(0)
    keys = jax.random.split(key, 16)
    k = 1.0 / jnp.sqrt(H)

    def u(rk, shape):
        return jax.random.uniform(rk, shape, jnp.float32, minval=-k, maxval=k)

    params = {
        "w_ih_l0": u(keys[0], (4 * H, V)),
        "w_hh_l0": u(keys[1], (4 * H, H)),
        "b_ih_l0": u(keys[2], (4 * H,)),
        "b_hh_l0": u(keys[3], (4 * H,)),
        "w_ih_l1": u(keys[4], (4 * H, H)),
        "w_hh_l1": u(keys[5], (4 * H, H)),
        "b_ih_l1": u(keys[6], (4 * H,)),
        "b_hh_l1": u(keys[7], (4 * H,)),
        "W_s": u(keys[8], (V, H)),
        "b_s": u(keys[9], (V,)),
    }

    # One-hot input sequence (the module is the "onehot" decoder variant).
    tok = jax.random.randint(keys[10], (B, S), 0, V)
    input_seq = jax.nn.one_hot(tok, V, dtype=jnp.float32)            # (B, S, V)
    h0 = 0.1 * jax.random.normal(keys[11], (L, B, H), jnp.float32)
    c0 = 0.1 * jax.random.normal(keys[12], (L, B, H), jnp.float32)

    out, (hn, cn) = decoder_forward(input_seq, (h0, c0), params)
    jax.block_until_ready((out, hn, cn))

    out_ref, (hn_ref, cn_ref) = reference_forward(input_seq, (h0, c0), params)
    assert out.shape == (S, B, V) and hn.shape == (L, B, H) and cn.shape == (L, B, H)
    # bf16 MXU operands with f32 accumulation / f32 cell state -> relaxed tolerance.
    assert jnp.allclose(out, out_ref, atol=2e-2, rtol=2e-2)
    assert jnp.allclose(hn, hn_ref, atol=2e-2, rtol=2e-2)
    assert jnp.allclose(cn, cn_ref, atol=2e-2, rtol=2e-2)

    print("KERNEL_OK")
</pallas_src>

<mosaic_0001>
module attributes {stable_mosaic.version = 11 : i64} {
  func.func @kernel(%arg0: i32, %arg1: memref<64x128xbf16, #tpu.memory_space<vmem>>, %arg2: memref<2x8x32xf32, #tpu.memory_space<vmem>>, %arg3: memref<2x8x32xf32, #tpu.memory_space<vmem>>, %arg4: memref<128x128xbf16, #tpu.memory_space<vmem>>, %arg5: memref<32x128xbf16, #tpu.memory_space<vmem>>, %arg6: memref<1x128xf32, #tpu.memory_space<vmem>>, %arg7: memref<64x128xbf16, #tpu.memory_space<vmem>>, %arg8: memref<1x128xf32, #tpu.memory_space<vmem>>, %arg9: memref<32x128xbf16, #tpu.memory_space<vmem>>, %arg10: memref<1x128xf32, #tpu.memory_space<vmem>>, %arg11: memref<64x128xf32, #tpu.memory_space<vmem>>, %arg12: memref<2x8x32xf32, #tpu.memory_space<vmem>>, %arg13: memref<2x8x32xf32, #tpu.memory_space<vmem>>, %arg14: memref<64x128xf32, #tpu.memory_space<vmem>>, %arg15: memref<64x32xf32, #tpu.memory_space<vmem>>, %arg16: memref<2x8x32xf32, #tpu.memory_space<vmem>>, %arg17: memref<2x8x32xf32, #tpu.memory_space<vmem>>) attributes {dimension_semantics = [#tpu.dimension_semantics<arbitrary>], iteration_bounds = array<i64: 1>, scalar_prefetch = 0 : i64, scratch_operands = 4 : i64, tpu.core_type = #tpu.core_type<tc>, window_params = [{transform_indices = @transform_0, window_bounds = array<i64: 64, 128>}, {pipeline_mode = #tpu.pipeline_mode<synchronous>, transform_indices = @transform_1, window_bounds = array<i64: 2, 8, 32>}, {pipeline_mode = #tpu.pipeline_mode<synchronous>, transform_indices = @transform_2, window_bounds = array<i64: 2, 8, 32>}, {pipeline_mode = #tpu.pipeline_mode<synchronous>, transform_indices = @transform_3, window_bounds = array<i64: 128, 128>}, {pipeline_mode = #tpu.pipeline_mode<synchronous>, transform_indices = @transform_4, window_bounds = array<i64: 32, 128>}, {pipeline_mode = #tpu.pipeline_mode<synchronous>, transform_indices = @transform_5, window_bounds = array<i64: 1, 128>}, {pipeline_mode = #tpu.pipeline_mode<synchronous>, transform_indices = @transform_6, window_bounds = array<i64: 64, 128>}, {pipeline_mode = #tpu.pipeline_mode<synchronous>, transform_indices = @transform_7, window_bounds = array<i64: 1, 128>}, {pipeline_mode = #tpu.pipeline_mode<synchronous>, transform_indices = @transform_8, window_bounds = array<i64: 32, 128>}, {pipeline_mode = #tpu.pipeline_mode<synchronous>, transform_indices = @transform_9, window_bounds = array<i64: 1, 128>}, {transform_indices = @transform_10, window_bounds = array<i64: 64, 128>}, {pipeline_mode = #tpu.pipeline_mode<synchronous>, transform_indices = @transform_11, window_bounds = array<i64: 2, 8, 32>}, {pipeline_mode = #tpu.pipeline_mode<synchronous>, transform_indices = @transform_12, window_bounds = array<i64: 2, 8, 32>}]} {
    %c0_i32 = arith.constant 0 : i32
    %0 = arith.cmpi eq, %arg0, %c0_i32 : i32
    %1 = arith.extui %0 : i1 to i32
    %c0_i32_0 = arith.constant 0 : i32
    %2 = arith.cmpi ne, %1, %c0_i32_0 : i32
    scf.if %2 {
      %c0_137 = arith.constant 0 : index
      %c0_138 = arith.constant 0 : index
      %c0_139 = arith.constant 0 : index
      %550 = vector.load %arg2[%c0_137, %c0_138, %c0_139] : memref<2x8x32xf32, #tpu.memory_space<vmem>>, vector<2x8x32xf32>
      %c0_140 = arith.constant 0 : index
      %c0_141 = arith.constant 0 : index
      %c0_142 = arith.constant 0 : index
      %551 = vector.load %arg16[%c0_140, %c0_141, %c0_142] : memref<2x8x32xf32, #tpu.memory_space<vmem>>, vector<2x8x32xf32>
      tpu.vector_store %arg16[%c0_140, %c0_141, %c0_142], %550 {strides = array<i32>} : memref<2x8x32xf32, #tpu.memory_space<vmem>>, vector<2x8x32xf32>,
      %c0_143 = arith.constant 0 : index
      %c0_144 = arith.constant 0 : index
      %c0_145 = arith.constant 0 : index
      %552 = vector.load %arg3[%c0_143, %c0_144, %c0_145] : memref<2x8x32xf32, #tpu.memory_space<vmem>>, vector<2x8x32xf32>
      %c0_146 = arith.constant 0 : index
      %c0_147 = arith.constant 0 : index
      %c0_148 = arith.constant 0 : index
      %553 = vector.load %arg17[%c0_146, %c0_147, %c0_148] : memref<2x8x32xf32, #tpu.memory_space<vmem>>, vector<2x8x32xf32>
      tpu.vector_store %arg17[%c0_146, %c0_147, %c0_148], %552 {strides = array<i32>} : memref<2x8x32xf32, #tpu.memory_space<vmem>>, vector<2x8x32xf32>,
    } else {
    }
    %c0 = arith.constant 0 : index
    %c0_1 = arith.constant 0 : index
    %3 = vector.load %arg1[%c0, %c0_1] : memref<64x128xbf16, #tpu.memory_space<vmem>>, vector<64x128xbf16>
    %c0_2 = arith.constant 0 : index
    %c0_3 = arith.constant 0 : index
    %4 = vector.load %arg4[%c0_2, %c0_3] : memref<128x128xbf16, #tpu.memory_space<vmem>>, vector<128x128xbf16>
    %cst = arith.constant dense<0.000000e+00> : vector<64x128xf32>
    %5 = tpu.matmul %3, %4, %cst {dimension_numbers = #tpu.dot_dimension_numbers<[1], [0], [0], [1], [0, 0, 1, 1], [], []>} : vector<64x128xbf16>, vector<128x128xbf16>, vector<64x128xf32> -> vector<64x128xf32>
    %c0_4 = arith.constant 0 : index
    %c0_5 = arith.constant 0 : index
    %6 = vector.load %arg6[%c0_4, %c0_5] : memref<1x128xf32, #tpu.memory_space<vmem>>, vector<1x128xf32>
    %7 = vector.broadcast %6 : vector<1x128xf32> to vector<64x128xf32>
    %8 = arith.addf %5, %7 : vector<64x128xf32>
    %c0_6 = arith.constant 0 : index
    %c0_7 = arith.constant 0 : index
    %9 = vector.load %arg14[%c0_6, %c0_7] : memref<64x128xf32, #tpu.memory_space<vmem>>, vector<64x128xf32>
    tpu.vector_store %arg14[%c0_6, %c0_7], %8 {strides = array<i32>} : memref<64x128xf32, #tpu.memory_space<vmem>>, vector<64x128xf32>,
    %c0_8 = arith.constant 0 : index
    %c0_9 = arith.constant 0 : index
    %10 = vector.load %arg5[%c0_8, %c0_9] : memref<32x128xbf16, #tpu.memory_space<vmem>>, vector<32x128xbf16>
    %c0_10 = arith.constant 0 : index
    %c0_11 = arith.constant 0 : index
    %11 = vector.load %arg7[%c0_10, %c0_11] : memref<64x128xbf16, #tpu.memory_space<vmem>>, vector<64x128xbf16>
    %c0_12 = arith.constant 0 : index
    %c0_13 = arith.constant 0 : index
    %12 = vector.load %arg8[%c0_12, %c0_13] : memref<1x128xf32, #tpu.memory_space<vmem>>, vector<1x128xf32>
    %13 = vector.shape_cast %12 : vector<1x128xf32> to vector<1x128xf32>
    %14 = vector.broadcast %13 : vector<1x128xf32> to vector<8x128xf32>
    %c0_14 = arith.constant 0 : index
    %c0_15 = arith.constant 0 : index
    %c0_16 = arith.constant 0 : index
    %15 = vector.load %arg16[%c0_14, %c0_15, %c0_16] : memref<2x8x32xf32, #tpu.memory_space<vmem>>, vector<1x8x32xf32>
    %16 = vector.shape_cast %15 : vector<1x8x32xf32> to vector<8x32xf32>
    %c0_17 = arith.constant 0 : index
    %c0_18 = arith.constant 0 : index
    %c0_19 = arith.constant 0 : index
    %17 = vector.load %arg17[%c0_17, %c0_18, %c0_19] : memref<2x8x32xf32, #tpu.memory_space<vmem>>, vector<1x8x32xf32>
    %18 = vector.shape_cast %17 : vector<1x8x32xf32> to vector<8x32xf32>
    %c1 = arith.constant 1 : index
    %c0_20 = arith.constant 0 : index
    %c0_21 = arith.constant 0 : index
    %19 = vector.load %arg16[%c1, %c0_20, %c0_21] : memref<2x8x32xf32, #tpu.memory_space<vmem>>, vector<1x8x32xf32>
    %20 = vector.shape_cast %19 : vector<1x8x32xf32> to vector<8x32xf32>
    %c1_22 = arith.constant 1 : index
    %c0_23 = arith.constant 0 : index
    %c0_24 = arith.constant 0 : index
    %21 = vector.load %arg17[%c1_22, %c0_23, %c0_24] : memref<2x8x32xf32, #tpu.memory_space<vmem>>, vector<1x8x32xf32>
    %22 = vector.shape_cast %21 : vector<1x8x32xf32> to vector<8x32xf32>
    %c0_i32_25 = arith.constant 0 : i32
    %c8_i32 = arith.constant 8 : i32
    %23 = arith.muli %c0_i32_25, %c8_i32 : i32
    %24 = tpu.assume_multiple %23, 8 : i32
    %25 = arith.index_cast %24 : i32 to index
    %c0_26 = arith.constant 0 : index
    %26 = vector.load %arg14[%25, %c0_26] : memref<64x128xf32, #tpu.memory_space<vmem>>, vector<8x128xf32>
    %27 = arith.truncf %16 : vector<8x32xf32> to vector<8x32xbf16>
    %cst_27 = arith.constant dense<0.000000e+00> : vector<8x128xf32>
    %28 = tpu.matmul %27, %10, %cst_27 {dimension_numbers = #tpu.dot_dimension_numbers<[1], [0], [0], [1], [0, 0, 1, 1], [], []>} : vector<8x32xbf16>, vector<32x128xbf16>, vector<8x128xf32> -> vector<8x128xf32>
    %29 = arith.addf %26, %28 : vector<8x128xf32>
    %30 = vector.extract_strided_slice %29 {offsets = [0, 0], sizes = [8, 32], strides = [1, 1]} : vector<8x128xf32> to vector<8x32xf32>
    %31 = arith.negf %30 : vector<8x32xf32>
    %32 = math.exp %31 : vector<8x32xf32>
    %cst_28 = arith.constant 1.000000e+00 : f32
    %33 = vector.broadcast %cst_28 : f32 to vector<8x32xf32>
    %34 = arith.addf %33, %32 : vector<8x32xf32>
    %35 = arith.divf %33, %34 : vector<8x32xf32>
    %36 = vector.extract_strided_slice %29 {offsets = [0, 32], sizes = [8, 32], strides = [1, 1]} : vector<8x128xf32> to vector<8x32xf32>
    %37 = arith.negf %36 : vector<8x32xf32>
    %38 = math.exp %37 : vector<8x32xf32>
    %cst_29 = arith.constant 1.000000e+00 : f32
    %39 = vector.broadcast %cst_29 : f32 to vector<8x32xf32>
    %40 = arith.addf %39, %38 : vector<8x32xf32>
    %41 = arith.divf %39, %40 : vector<8x32xf32>
    %42 = vector.extract_strided_slice %29 {offsets = [0, 64], sizes = [8, 32], strides = [1, 1]} : vector<8x128xf32> to vector<8x32xf32>
    %43 = math.tanh %42 : vector<8x32xf32>
    %44 = vector.extract_strided_slice %29 {offsets = [0, 96], sizes = [8, 32], strides = [1, 1]} : vector<8x128xf32> to vector<8x32xf32>
    %45 = arith.negf %44 : vector<8x32xf32>
    %46 = math.exp %45 : vector<8x32xf32>
    %cst_30 = arith.constant 1.000000e+00 : f32
    %47 = vector.broadcast %cst_30 : f32 to vector<8x32xf32>
    %48 = arith.addf %47, %46 : vector<8x32xf32>
    %49 = arith.divf %47, %48 : vector<8x32xf32>
    %50 = arith.mulf %41, %18 : vector<8x32xf32>
    %51 = arith.mulf %35, %43 : vector<8x32xf32>
    %52 = arith.addf %50, %51 : vector<8x32xf32>
    %53 = math.tanh %52 : vector<8x32xf32>
    %54 = arith.mulf %49, %53 : vector<8x32xf32>
    %55 = tpu.concatenate %54, %20 in 1 : vector<8x32xf32>, vector<8x32xf32> -> vector<8x64xf32>
    %56 = arith.truncf %55 : vector<8x64xf32> to vector<8x64xbf16>
    %cst_31 = arith.constant dense<0.000000e+00> : vector<8x128xf32>
    %57 = tpu.matmul %56, %11, %cst_31 {dimension_numbers = #tpu.dot_dimension_numbers<[1], [0], [0], [1], [0, 0, 1, 1], [], []>} : vector<8x64xbf16>, vector<64x128xbf16>, vector<8x128xf32> -> vector<8x128xf32>
    %58 = arith.addf %57, %14 : vector<8x128xf32>
    %59 = vector.extract_strided_slice %58 {offsets = [0, 0], sizes = [8, 32], strides = [1, 1]} : vector<8x128xf32> to vector<8x32xf32>
    %60 = arith.negf %59 : vector<8x32xf32>
    %61 = math.exp %60 : vector<8x32xf32>
    %cst_32 = arith.constant 1.000000e+00 : f32
    %62 = vector.broadcast %cst_32 : f32 to vector<8x32xf32>
    %63 = arith.addf %62, %61 : vector<8x32xf32>
    %64 = arith.divf %62, %63 : vector<8x32xf32>
    %65 = vector.extract_strided_slice %58 {offsets = [0, 32], sizes = [8, 32], strides = [1, 1]} : vector<8x128xf32> to vector<8x32xf32>
    %66 = arith.negf %65 : vector<8x32xf32>
    %67 = math.exp %66 : vector<8x32xf32>
    %cst_33 = arith.constant 1.000000e+00 : f32
    %68 = vector.broadcast %cst_33 : f32 to vector<8x32xf32>
    %69 = arith.addf %68, %67 : vector<8x32xf32>
    %70 = arith.divf %68, %69 : vector<8x32xf32>
    %71 = vector.extract_strided_slice %58 {offsets = [0, 64], sizes = [8, 32], strides = [1, 1]} : vector<8x128xf32> to vector<8x32xf32>
    %72 = math.tanh %71 : vector<8x32xf32>
    %73 = vector.extract_strided_slice %58 {offsets = [0, 96], sizes = [8, 32], strides = [1, 1]} : vector<8x128xf32> to vector<8x32xf32>
    %74 = arith.negf %73 : vector<8x32xf32>
    %75 = math.exp %74 : vector<8x32xf32>
    %cst_34 = arith.constant 1.000000e+00 : f32
    %76 = vector.broadcast %cst_34 : f32 to vector<8x32xf32>
    %77 = arith.addf %76, %75 : vector<8x32xf32>
    %78 = arith.divf %76, %77 : vector<8x32xf32>
    %79 = arith.mulf %70, %22 : vector<8x32xf32>
    %80 = arith.mulf %64, %72 : vector<8x32xf32>
    %81 = arith.addf %79, %80 : vector<8x32xf32>
    %82 = math.tanh %81 : vector<8x32xf32>
    %83 = arith.mulf %78, %82 : vector<8x32xf32>
    %84 = arith.index_cast %24 : i32 to index
    %c0_35 = arith.constant 0 : index
    %85 = vector.load %arg15[%84, %c0_35] : memref<64x32xf32, #tpu.memory_space<vmem>>, vector<8x32xf32>
    tpu.vector_store %arg15[%84, %c0_35], %83 {strides = array<i32>} : memref<64x32xf32, #tpu.memory_space<vmem>>, vector<8x32xf32>,
    %c1_i32 = arith.constant 1 : i32
    %c8_i32_36 = arith.constant 8 : i32
    %86 = arith.muli %c1_i32, %c8_i32_36 : i32
    %87 = tpu.assume_multiple %86, 8 : i32
    %88 = arith.index_cast %87 : i32 to index
    %c0_37 = arith.constant 0 : index
    %89 = vector.load %arg14[%88, %c0_37] : memref<64x128xf32, #tpu.memory_space<vmem>>, vector<8x128xf32>
    %90 = arith.truncf %54 : vector<8x32xf32> to vector<8x32xbf16>
    %cst_38 = arith.constant dense<0.000000e+00> : vector<8x128xf32>
    %91 = tpu.matmul %90, %10, %cst_38 {dimension_numbers = #tpu.dot_dimension_numbers<[1], [0], [0], [1], [0, 0, 1, 1], [], []>} : vector<8x32xbf16>, vector<32x128xbf16>, vector<8x128xf32> -> vector<8x128xf32>
    %92 = arith.addf %89, %91 : vector<8x128xf32>
    %93 = vector.extract_strided_slice %92 {offsets = [0, 0], sizes = [8, 32], strides = [1, 1]} : vector<8x128xf32> to vector<8x32xf32>
    %94 = arith.negf %93 : vector<8x32xf32>
    %95 = math.exp %94 : vector<8x32xf32>
    %cst_39 = arith.constant 1.000000e+00 : f32
    %96 = vector.broadcast %cst_39 : f32 to vector<8x32xf32>
    %97 = arith.addf %96, %95 : vector<8x32xf32>
    %98 = arith.divf %96, %97 : vector<8x32xf32>
    %99 = vector.extract_strided_slice %92 {offsets = [0, 32], sizes = [8, 32], strides = [1, 1]} : vector<8x128xf32> to vector<8x32xf32>
    %100 = arith.negf %99 : vector<8x32xf32>
    %101 = math.exp %100 : vector<8x32xf32>
    %cst_40 = arith.constant 1.000000e+00 : f32
    %102 = vector.broadcast %cst_40 : f32 to vector<8x32xf32>
    %103 = arith.addf %102, %101 : vector<8x32xf32>
    %104 = arith.divf %102, %103 : vector<8x32xf32>
    %105 = vector.extract_strided_slice %92 {offsets = [0, 64], sizes = [8, 32], strides = [1, 1]} : vector<8x128xf32> to vector<8x32xf32>
    %106 = math.tanh %105 : vector<8x32xf32>
    %107 = vector.extract_strided_slice %92 {offsets = [0, 96], sizes = [8, 32], strides = [1, 1]} : vector<8x128xf32> to vector<8x32xf32>
    %108 = arith.negf %107 : vector<8x32xf32>
    %109 = math.exp %108 : vector<8x32xf32>
    %cst_41 = arith.constant 1.000000e+00 : f32
    %110 = vector.broadcast %cst_41 : f32 to vector<8x32xf32>
    %111 = arith.addf %110, %109 : vector<8x32xf32>
    %112 = arith.divf %110, %111 : vector<8x32xf32>
    %113 = arith.mulf %104, %52 : vector<8x32xf32>
    %114 = arith.mulf %98, %106 : vector<8x32xf32>
    %115 = arith.addf %113, %114 : vector<8x32xf32>
    %116 = math.tanh %115 : vector<8x32xf32>
    %117 = arith.mulf %112, %116 : vector<8x32xf32>
    %118 = tpu.concatenate %117, %83 in 1 : vector<8x32xf32>, vector<8x32xf32> -> vector<8x64xf32>
    %119 = arith.truncf %118 : vector<8x64xf32> to vector<8x64xbf16>
    %cst_42 = arith.constant dense<0.000000e+00> : vector<8x128xf32>
    %120 = tpu.matmul %119, %11, %cst_42 {dimension_numbers = #tpu.dot_dimension_numbers<[1], [0], [0], [1], [0, 0, 1, 1], [], []>} : vector<8x64xbf16>, vector<64x128xbf16>, vector<8x128xf32> -> vector<8x128xf32>
    %121 = arith.addf %120, %14 : vector<8x128xf32>
    %122 = vector.extract_strided_slice %121 {offsets = [0, 0], sizes = [8, 32], strides = [1, 1]} : vector<8x128xf32> to vector<8x32xf32>
    %123 = arith.negf %122 : vector<8x32xf32>
    %124 = math.exp %123 : vector<8x32xf32>
    %cst_43 = arith.constant 1.000000e+00 : f32
    %125 = vector.broadcast %cst_43 : f32 to vector<8x32xf32>
    %126 = arith.addf %125, %124 : vector<8x32xf32>
    %127 = arith.divf %125, %126 : vector<8x32xf32>
    %128 = vector.extract_strided_slice %121 {offsets = [0, 32], sizes = [8, 32], strides = [1, 1]} : vector<8x128xf32> to vector<8x32xf32>
    %129 = arith.negf %128 : vector<8x32xf32>
    %130 = math.exp %129 : vector<8x32xf32>
    %cst_44 = arith.constant 1.000000e+00 : f32
    %131 = vector.broadcast %cst_44 : f32 to vector<8x32xf32>
    %132 = arith.addf %131, %130 : vector<8x32xf32>
    %133 = arith.divf %131, %132 : vector<8x32xf32>
    %134 = vector.extract_strided_slice %121 {offsets = [0, 64], sizes = [8, 32], strides = [1, 1]} : vector<8x128xf32> to vector<8x32xf32>
    %135 = math.tanh %134 : vector<8x32xf32>
    %136 = vector.extract_strided_slice %121 {offsets = [0, 96], sizes = [8, 32], strides = [1, 1]} : vector<8x128xf32> to vector<8x32xf32>
    %137 = arith.negf %136 : vector<8x32xf32>
    %138 = math.exp %137 : vector<8x32xf32>
    %cst_45 = arith.constant 1.000000e+00 : f32
    %139 = vector.broadcast %cst_45 : f32 to vector<8x32xf32>
    %140 = arith.addf %139, %138 : vector<8x32xf32>
    %141 = arith.divf %139, %140 : vector<8x32xf32>
    %142 = arith.mulf %133, %81 : vector<8x32xf32>
    %143 = arith.mulf %127, %135 : vector<8x32xf32>
    %144 = arith.addf %142, %143 : vector<8x32xf32>
    %145 = math.tanh %144 : vector<8x32xf32>
    %146 = arith.mulf %141, %145 : vector<8x32xf32>
    %147 = arith.index_cast %87 : i32 to index
    %c0_46 = arith.constant 0 : index
    %148 = vector.load %arg15[%147, %c0_46] : memref<64x32xf32, #tpu.memory_space<vmem>>, vector<8x32xf32>
    tpu.vector_store %arg15[%147, %c0_46], %146 {strides = array<i32>} : memref<64x32xf32, #tpu.memory_space<vmem>>, vector<8x32xf32>,
    %c2_i32 = arith.constant 2 : i32
    %c8_i32_47 = arith.constant 8 : i32
    %149 = arith.muli %c2_i32, %c8_i32_47 : i32
    %150 = tpu.assume_multiple %149, 8 : i32
    %151 = arith.index_cast %150 : i32 to index
    %c0_48 = arith.constant 0 : index
    %152 = vector.load %arg14[%151, %c0_48] : memref<64x128xf32, #tpu.memory_space<vmem>>, vector<8x128xf32>
    %153 = arith.truncf %117 : vector<8x32xf32> to vector<8x32xbf16>
    %cst_49 = arith.constant dense<0.000000e+00> : vector<8x128xf32>
    %154 = tpu.matmul %153, %10, %cst_49 {dimension_numbers = #tpu.dot_dimension_numbers<[1], [0], [0], [1], [0, 0, 1, 1], [], []>} : vector<8x32xbf16>, vector<32x128xbf16>, vector<8x128xf32> -> vector<8x128xf32>
    %155 = arith.addf %152, %154 : vector<8x128xf32>
    %156 = vector.extract_strided_slice %155 {offsets = [0, 0], sizes = [8, 32], strides = [1, 1]} : vector<8x128xf32> to vector<8x32xf32>
    %157 = arith.negf %156 : vector<8x32xf32>
    %158 = math.exp %157 : vector<8x32xf32>
    %cst_50 = arith.constant 1.000000e+00 : f32
    %159 = vector.broadcast %cst_50 : f32 to vector<8x32xf32>
    %160 = arith.addf %159, %158 : vector<8x32xf32>
    %161 = arith.divf %159, %160 : vector<8x32xf32>
    %162 = vector.extract_strided_slice %155 {offsets = [0, 32], sizes = [8, 32], strides = [1, 1]} : vector<8x128xf32> to vector<8x32xf32>
    %163 = arith.negf %162 : vector<8x32xf32>
    %164 = math.exp %163 : vector<8x32xf32>
    %cst_51 = arith.constant 1.000000e+00 : f32
    %165 = vector.broadcast %cst_51 : f32 to vector<8x32xf32>
    %166 = arith.addf %165, %164 : vector<8x32xf32>
    %167 = arith.divf %165, %166 : vector<8x32xf32>
    %168 = vector.extract_strided_slice %155 {offsets = [0, 64], sizes = [8, 32], strides = [1, 1]} : vector<8x128xf32> to vector<8x32xf32>
    %169 = math.tanh %168 : vector<8x32xf32>
    %170 = vector.extract_strided_slice %155 {offsets = [0, 96], sizes = [8, 32], strides = [1, 1]} : vector<8x128xf32> to vector<8x32xf32>
    %171 = arith.negf %170 : vector<8x32xf32>
    %172 = math.exp %171 : vector<8x32xf32>
    %cst_52 = arith.constant 1.000000e+00 : f32
    %173 = vector.broadcast %cst_52 : f32 to vector<8x32xf32>
    %174 = arith.addf %173, %172 : vector<8x32xf32>
    %175 = arith.divf %173, %174 : vector<8x32xf32>
    %176 = arith.mulf %167, %115 : vector<8x32xf32>
    %177 = arith.mulf %161, %169 : vector<8x32xf32>
    %178 = arith.addf %176, %177 : vector<8x32xf32>
    %179 = math.tanh %178 : vector<8x32xf32>
    %180 = arith.mulf %175, %179 : vector<8x32xf32>
    %181 = tpu.concatenate %180, %146 in 1 : vector<8x32xf32>, vector<8x32xf32> -> vector<8x64xf32>
    %182 = arith.truncf %181 : vector<8x64xf32> to vector<8x64xbf16>
    %cst_53 = arith.constant dense<0.000000e+00> : vector<8x128xf32>
    %183 = tpu.matmul %182, %11, %cst_53 {dimension_numbers = #tpu.dot_dimension_numbers<[1], [0], [0], [1], [0, 0, 1, 1], [], []>} : vector<8x64xbf16>, vector<64x128xbf16>, vector<8x128xf32> -> vector<8x128xf32>
    %184 = arith.addf %183, %14 : vector<8x128xf32>
    %185 = vector.extract_strided_slice %184 {offsets = [0, 0], sizes = [8, 32], strides = [1, 1]} : vector<8x128xf32> to vector<8x32xf32>
    %186 = arith.negf %185 : vector<8x32xf32>
    %187 = math.exp %186 : vector<8x32xf32>
    %cst_54 = arith.constant 1.000000e+00 : f32
    %188 = vector.broadcast %cst_54 : f32 to vector<8x32xf32>
    %189 = arith.addf %188, %187 : vector<8x32xf32>
    %190 = arith.divf %188, %189 : vector<8x32xf32>
    %191 = vector.extract_strided_slice %184 {offsets = [0, 32], sizes = [8, 32], strides = [1, 1]} : vector<8x128xf32> to vector<8x32xf32>
    %192 = arith.negf %191 : vector<8x32xf32>
    %193 = math.exp %192 : vector<8x32xf32>
    %cst_55 = arith.constant 1.000000e+00 : f32
    %194 = vector.broadcast %cst_55 : f32 to vector<8x32xf32>
    %195 = arith.addf %194, %193 : vector<8x32xf32>
    %196 = arith.divf %194, %195 : vector<8x32xf32>
    %197 = vector.extract_strided_slice %184 {offsets = [0, 64], sizes = [8, 32], strides = [1, 1]} : vector<8x128xf32> to vector<8x32xf32>
    %198 = math.tanh %197 : vector<8x32xf32>
    %199 = vector.extract_strided_slice %184 {offsets = [0, 96], sizes = [8, 32], strides = [1, 1]} : vector<8x128xf32> to vector<8x32xf32>
    %200 = arith.negf %199 : vector<8x32xf32>
    %201 = math.exp %200 : vector<8x32xf32>
    %cst_56 = arith.constant 1.000000e+00 : f32
    %202 = vector.broadcast %cst_56 : f32 to vector<8x32xf32>
    %203 = arith.addf %202, %201 : vector<8x32xf32>
    %204 = arith.divf %202, %203 : vector<8x32xf32>
    %205 = arith.mulf %196, %144 : vector<8x32xf32>
    %206 = arith.mulf %190, %198 : vector<8x32xf32>
    %207 = arith.addf %205, %206 : vector<8x32xf32>
    %208 = math.tanh %207 : vector<8x32xf32>
    %209 = arith.mulf %204, %208 : vector<8x32xf32>
    %210 = arith.index_cast %150 : i32 to index
    %c0_57 = arith.constant 0 : index
    %211 = vector.load %arg15[%210, %c0_57] : memref<64x32xf32, #tpu.memory_space<vmem>>, vector<8x32xf32>
    tpu.vector_store %arg15[%210, %c0_57], %209 {strides = array<i32>} : memref<64x32xf32, #tpu.memory_space<vmem>>, vector<8x32xf32>,
    %c3_i32 = arith.constant 3 : i32
    %c8_i32_58 = arith.constant 8 : i32
    %212 = arith.muli %c3_i32, %c8_i32_58 : i32
    %213 = tpu.assume_multiple %212, 8 : i32
    %214 = arith.index_cast %213 : i32 to index
    %c0_59 = arith.constant 0 : index
    %215 = vector.load %arg14[%214, %c0_59] : memref<64x128xf32, #tpu.memory_space<vmem>>, vector<8x128xf32>
    %216 = arith.truncf %180 : vector<8x32xf32> to vector<8x32xbf16>
    %cst_60 = arith.constant dense<0.000000e+00> : vector<8x128xf32>
    %217 = tpu.matmul %216, %10, %cst_60 {dimension_numbers = #tpu.dot_dimension_numbers<[1], [0], [0], [1], [0, 0, 1, 1], [], []>} : vector<8x32xbf16>, vector<32x128xbf16>, vector<8x128xf32> -> vector<8x128xf32>
    %218 = arith.addf %215, %217 : vector<8x128xf32>
    %219 = vector.extract_strided_slice %218 {offsets = [0, 0], sizes = [8, 32], strides = [1, 1]} : vector<8x128xf32> to vector<8x32xf32>
    %220 = arith.negf %219 : vector<8x32xf32>
    %221 = math.exp %220 : vector<8x32xf32>
    %cst_61 = arith.constant 1.000000e+00 : f32
    %222 = vector.broadcast %cst_61 : f32 to vector<8x32xf32>
    %223 = arith.addf %222, %221 : vector<8x32xf32>
    %224 = arith.divf %222, %223 : vector<8x32xf32>
    %225 = vector.extract_strided_slice %218 {offsets = [0, 32], sizes = [8, 32], strides = [1, 1]} : vector<8x128xf32> to vector<8x32xf32>
    %226 = arith.negf %225 : vector<8x32xf32>
    %227 = math.exp %226 : vector<8x32xf32>
    %cst_62 = arith.constant 1.000000e+00 : f32
    %228 = vector.broadcast %cst_62 : f32 to vector<8x32xf32>
    %229 = arith.addf %228, %227 : vector<8x32xf32>
    %230 = arith.divf %228, %229 : vector<8x32xf32>
    %231 = vector.extract_strided_slice %218 {offsets = [0, 64], sizes = [8, 32], strides = [1, 1]} : vector<8x128xf32> to vector<8x32xf32>
    %232 = math.tanh %231 : vector<8x32xf32>
    %233 = vector.extract_strided_slice %218 {offsets = [0, 96], sizes = [8, 32], strides = [1, 1]} : vector<8x128xf32> to vector<8x32xf32>
    %234 = arith.negf %233 : vector<8x32xf32>
    %235 = math.exp %234 : vector<8x32xf32>
    %cst_63 = arith.constant 1.000000e+00 : f32
    %236 = vector.broadcast %cst_63 : f32 to vector<8x32xf32>
    %237 = arith.addf %236, %235 : vector<8x32xf32>
    %238 = arith.divf %236, %237 : vector<8x32xf32>
    %239 = arith.mulf %230, %178 : vector<8x32xf32>
    %240 = arith.mulf %224, %232 : vector<8x32xf32>
    %241 = arith.addf %239, %240 : vector<8x32xf32>
    %242 = math.tanh %241 : vector<8x32xf32>
    %243 = arith.mulf %238, %242 : vector<8x32xf32>
    %244 = tpu.concatenate %243, %209 in 1 : vector<8x32xf32>, vector<8x32xf32> -> vector<8x64xf32>
    %245 = arith.truncf %244 : vector<8x64xf32> to vector<8x64xbf16>
    %cst_64 = arith.constant dense<0.000000e+00> : vector<8x128xf32>
    %246 = tpu.matmul %245, %11, %cst_64 {dimension_numbers = #tpu.dot_dimension_numbers<[1], [0], [0], [1], [0, 0, 1, 1], [], []>} : vector<8x64xbf16>, vector<64x128xbf16>, vector<8x128xf32> -> vector<8x128xf32>
    %247 = arith.addf %246, %14 : vector<8x128xf32>
    %248 = vector.extract_strided_slice %247 {offsets = [0, 0], sizes = [8, 32], strides = [1, 1]} : vector<8x128xf32> to vector<8x32xf32>
    %249 = arith.negf %248 : vector<8x32xf32>
    %250 = math.exp %249 : vector<8x32xf32>
    %cst_65 = arith.constant 1.000000e+00 : f32
    %251 = vector.broadcast %cst_65 : f32 to vector<8x32xf32>
    %252 = arith.addf %251, %250 : vector<8x32xf32>
    %253 = arith.divf %251, %252 : vector<8x32xf32>
    %254 = vector.extract_strided_slice %247 {offsets = [0, 32], sizes = [8, 32], strides = [1, 1]} : vector<8x128xf32> to vector<8x32xf32>
    %255 = arith.negf %254 : vector<8x32xf32>
    %256 = math.exp %255 : vector<8x32xf32>
    %cst_66 = arith.constant 1.000000e+00 : f32
    %257 = vector.broadcast %cst_66 : f32 to vector<8x32xf32>
    %258 = arith.addf %257, %256 : vector<8x32xf32>
    %259 = arith.divf %257, %258 : vector<8x32xf32>
    %260 = vector.extract_strided_slice %247 {offsets = [0, 64], sizes = [8, 32], strides = [1, 1]} : vector<8x128xf32> to vector<8x32xf32>
    %261 = math.tanh %260 : vector<8x32xf32>
    %262 = vector.extract_strided_slice %247 {offsets = [0, 96], sizes = [8, 32], strides = [1, 1]} : vector<8x128xf32> to vector<8x32xf32>
    %263 = arith.negf %262 : vector<8x32xf32>
    %264 = math.exp %263 : vector<8x32xf32>
    %cst_67 = arith.constant 1.000000e+00 : f32
    %265 = vector.broadcast %cst_67 : f32 to vector<8x32xf32>
    %266 = arith.addf %265, %264 : vector<8x32xf32>
    %267 = arith.divf %265, %266 : vector<8x32xf32>
    %268 = arith.mulf %259, %207 : vector<8x32xf32>
    %269 = arith.mulf %253, %261 : vector<8x32xf32>
    %270 = arith.addf %268, %269 : vector<8x32xf32>
    %271 = math.tanh %270 : vector<8x32xf32>
    %272 = arith.mulf %267, %271 : vector<8x32xf32>
    %273 = arith.index_cast %213 : i32 to index
    %c0_68 = arith.constant 0 : index
    %274 = vector.load %arg15[%273, %c0_68] : memref<64x32xf32, #tpu.memory_space<vmem>>, vector<8x32xf32>
    tpu.vector_store %arg15[%273, %c0_68], %272 {strides = array<i32>} : memref<64x32xf32, #tpu.memory_space<vmem>>, vector<8x32xf32>,
    %c4_i32 = arith.constant 4 : i32
    %c8_i32_69 = arith.constant 8 : i32
    %275 = arith.muli %c4_i32, %c8_i32_69 : i32
    %276 = tpu.assume_multiple %275, 8 : i32
    %277 = arith.index_cast %276 : i32 to index
    %c0_70 = arith.constant 0 : index
    %278 = vector.load %arg14[%277, %c0_70] : memref<64x128xf32, #tpu.memory_space<vmem>>, vector<8x128xf32>
    %279 = arith.truncf %243 : vector<8x32xf32> to vector<8x32xbf16>
    %cst_71 = arith.constant dense<0.000000e+00> : vector<8x128xf32>
    %280 = tpu.matmul %279, %10, %cst_71 {dimension_numbers = #tpu.dot_dimension_numbers<[1], [0], [0], [1], [0, 0, 1, 1], [], []>} : vector<8x32xbf16>, vector<32x128xbf16>, vector<8x128xf32> -> vector<8x128xf32>
    %281 = arith.addf %278, %280 : vector<8x128xf32>
    %282 = vector.extract_strided_slice %281 {offsets = [0, 0], sizes = [8, 32], strides = [1, 1]} : vector<8x128xf32> to vector<8x32xf32>
    %283 = arith.negf %282 : vector<8x32xf32>
    %284 = math.exp %283 : vector<8x32xf32>
    %cst_72 = arith.constant 1.000000e+00 : f32
    %285 = vector.broadcast %cst_72 : f32 to vector<8x32xf32>
    %286 = arith.addf %285, %284 : vector<8x32xf32>
    %287 = arith.divf %285, %286 : vector<8x32xf32>
    %288 = vector.extract_strided_slice %281 {offsets = [0, 32], sizes = [8, 32], strides = [1, 1]} : vector<8x128xf32> to vector<8x32xf32>
    %289 = arith.negf %288 : vector<8x32xf32>
    %290 = math.exp %289 : vector<8x32xf32>
    %cst_73 = arith.constant 1.000000e+00 : f32
    %291 = vector.broadcast %cst_73 : f32 to vector<8x32xf32>
    %292 = arith.addf %291, %290 : vector<8x32xf32>
    %293 = arith.divf %291, %292 : vector<8x32xf32>
    %294 = vector.extract_strided_slice %281 {offsets = [0, 64], sizes = [8, 32], strides = [1, 1]} : vector<8x128xf32> to vector<8x32xf32>
    %295 = math.tanh %294 : vector<8x32xf32>
    %296 = vector.extract_strided_slice %281 {offsets = [0, 96], sizes = [8, 32], strides = [1, 1]} : vector<8x128xf32> to vector<8x32xf32>
    %297 = arith.negf %296 : vector<8x32xf32>
    %298 = math.exp %297 : vector<8x32xf32>
    %cst_74 = arith.constant 1.000000e+00 : f32
    %299 = vector.broadcast %cst_74 : f32 to vector<8x32xf32>
    %300 = arith.addf %299, %298 : vector<8x32xf32>
    %301 = arith.divf %299, %300 : vector<8x32xf32>
    %302 = arith.mulf %293, %241 : vector<8x32xf32>
    %303 = arith.mulf %287, %295 : vector<8x32xf32>
    %304 = arith.addf %302, %303 : vector<8x32xf32>
    %305 = math.tanh %304 : vector<8x32xf32>
    %306 = arith.mulf %301, %305 : vector<8x32xf32>
    %307 = tpu.concatenate %306, %272 in 1 : vector<8x32xf32>, vector<8x32xf32> -> vector<8x64xf32>
    %308 = arith.truncf %307 : vector<8x64xf32> to vector<8x64xbf16>
    %cst_75 = arith.constant dense<0.000000e+00> : vector<8x128xf32>
    %309 = tpu.matmul %308, %11, %cst_75 {dimension_numbers = #tpu.dot_dimension_numbers<[1], [0], [0], [1], [0, 0, 1, 1], [], []>} : vector<8x64xbf16>, vector<64x128xbf16>, vector<8x128xf32> -> vector<8x128xf32>
    %310 = arith.addf %309, %14 : vector<8x128xf32>
    %311 = vector.extract_strided_slice %310 {offsets = [0, 0], sizes = [8, 32], strides = [1, 1]} : vector<8x128xf32> to vector<8x32xf32>
    %312 = arith.negf %311 : vector<8x32xf32>
    %313 = math.exp %312 : vector<8x32xf32>
    %cst_76 = arith.constant 1.000000e+00 : f32
    %314 = vector.broadcast %cst_76 : f32 to vector<8x32xf32>
    %315 = arith.addf %314, %313 : vector<8x32xf32>
    %316 = arith.divf %314, %315 : vector<8x32xf32>
    %317 = vector.extract_strided_slice %310 {offsets = [0, 32], sizes = [8, 32], strides = [1, 1]} : vector<8x128xf32> to vector<8x32xf32>
    %318 = arith.negf %317 : vector<8x32xf32>
    %319 = math.exp %318 : vector<8x32xf32>
    %cst_77 = arith.constant 1.000000e+00 : f32
    %320 = vector.broadcast %cst_77 : f32 to vector<8x32xf32>
    %321 = arith.addf %320, %319 : vector<8x32xf32>
    %322 = arith.divf %320, %321 : vector<8x32xf32>
    %323 = vector.extract_strided_slice %310 {offsets = [0, 64], sizes = [8, 32], strides = [1, 1]} : vector<8x128xf32> to vector<8x32xf32>
    %324 = math.tanh %323 : vector<8x32xf32>
    %325 = vector.extract_strided_slice %310 {offsets = [0, 96], sizes = [8, 32], strides = [1, 1]} : vector<8x128xf32> to vector<8x32xf32>
    %326 = arith.negf %325 : vector<8x32xf32>
    %327 = math.exp %326 : vector<8x32xf32>
    %cst_78 = arith.constant 1.000000e+00 : f32
    %328 = vector.broadcast %cst_78 : f32 to vector<8x32xf32>
    %329 = arith.addf %328, %327 : vector<8x32xf32>
    %330 = arith.divf %328, %329 : vector<8x32xf32>
    %331 = arith.mulf %322, %270 : vector<8x32xf32>
    %332 = arith.mulf %316, %324 : vector<8x32xf32>
    %333 = arith.addf %331, %332 : vector<8x32xf32>
    %334 = math.tanh %333 : vector<8x32xf32>
    %335 = arith.mulf %330, %334 : vector<8x32xf32>
    %336 = arith.index_cast %276 : i32 to index
    %c0_79 = arith.constant 0 : index
    %337 = vector.load %arg15[%336, %c0_79] : memref<64x32xf32, #tpu.memory_space<vmem>>, vector<8x32xf32>
    tpu.vector_store %arg15[%336, %c0_79], %335 {strides = array<i32>} : memref<64x32xf32, #tpu.memory_space<vmem>>, vector<8x32xf32>,
    %c5_i32 = arith.constant 5 : i32
    %c8_i32_80 = arith.constant 8 : i32
    %338 = arith.muli %c5_i32, %c8_i32_80 : i32
    %339 = tpu.assume_multiple %338, 8 : i32
    %340 = arith.index_cast %339 : i32 to index
    %c0_81 = arith.constant 0 : index
    %341 = vector.load %arg14[%340, %c0_81] : memref<64x128xf32, #tpu.memory_space<vmem>>, vector<8x128xf32>
    %342 = arith.truncf %306 : vector<8x32xf32> to vector<8x32xbf16>
    %cst_82 = arith.constant dense<0.000000e+00> : vector<8x128xf32>
    %343 = tpu.matmul %342, %10, %cst_82 {dimension_numbers = #tpu.dot_dimension_numbers<[1], [0], [0], [1], [0, 0, 1, 1], [], []>} : vector<8x32xbf16>, vector<32x128xbf16>, vector<8x128xf32> -> vector<8x128xf32>
    %344 = arith.addf %341, %343 : vector<8x128xf32>
    %345 = vector.extract_strided_slice %344 {offsets = [0, 0], sizes = [8, 32], strides = [1, 1]} : vector<8x128xf32> to vector<8x32xf32>
    %346 = arith.negf %345 : vector<8x32xf32>
    %347 = math.exp %346 : vector<8x32xf32>
    %cst_83 = arith.constant 1.000000e+00 : f32
    %348 = vector.broadcast %cst_83 : f32 to vector<8x32xf32>
    %349 = arith.addf %348, %347 : vector<8x32xf32>
    %350 = arith.divf %348, %349 : vector<8x32xf32>
    %351 = vector.extract_strided_slice %344 {offsets = [0, 32], sizes = [8, 32], strides = [1, 1]} : vector<8x128xf32> to vector<8x32xf32>
    %352 = arith.negf %351 : vector<8x32xf32>
    %353 = math.exp %352 : vector<8x32xf32>
    %cst_84 = arith.constant 1.000000e+00 : f32
    %354 = vector.broadcast %cst_84 : f32 to vector<8x32xf32>
    %355 = arith.addf %354, %353 : vector<8x32xf32>
    %356 = arith.divf %354, %355 : vector<8x32xf32>
    %357 = vector.extract_strided_slice %344 {offsets = [0, 64], sizes = [8, 32], strides = [1, 1]} : vector<8x128xf32> to vector<8x32xf32>
    %358 = math.tanh %357 : vector<8x32xf32>
    %359 = vector.extract_strided_slice %344 {offsets = [0, 96], sizes = [8, 32], strides = [1, 1]} : vector<8x128xf32> to vector<8x32xf32>
    %360 = arith.negf %359 : vector<8x32xf32>
    %361 = math.exp %360 : vector<8x32xf32>
    %cst_85 = arith.constant 1.000000e+00 : f32
    %362 = vector.broadcast %cst_85 : f32 to vector<8x32xf32>
    %363 = arith.addf %362, %361 : vector<8x32xf32>
    %364 = arith.divf %362, %363 : vector<8x32xf32>
    %365 = arith.mulf %356, %304 : vector<8x32xf32>
    %366 = arith.mulf %350, %358 : vector<8x32xf32>
    %367 = arith.addf %365, %366 : vector<8x32xf32>
    %368 = math.tanh %367 : vector<8x32xf32>
    %369 = arith.mulf %364, %368 : vector<8x32xf32>
    %370 = tpu.concatenate %369, %335 in 1 : vector<8x32xf32>, vector<8x32xf32> -> vector<8x64xf32>
    %371 = arith.truncf %370 : vector<8x64xf32> to vector<8x64xbf16>
    %cst_86 = arith.constant dense<0.000000e+00> : vector<8x128xf32>
    %372 = tpu.matmul %371, %11, %cst_86 {dimension_numbers = #tpu.dot_dimension_numbers<[1], [0], [0], [1], [0, 0, 1, 1], [], []>} : vector<8x64xbf16>, vector<64x128xbf16>, vector<8x128xf32> -> vector<8x128xf32>
    %373 = arith.addf %372, %14 : vector<8x128xf32>
    %374 = vector.extract_strided_slice %373 {offsets = [0, 0], sizes = [8, 32], strides = [1, 1]} : vector<8x128xf32> to vector<8x32xf32>
    %375 = arith.negf %374 : vector<8x32xf32>
    %376 = math.exp %375 : vector<8x32xf32>
    %cst_87 = arith.constant 1.000000e+00 : f32
    %377 = vector.broadcast %cst_87 : f32 to vector<8x32xf32>
    %378 = arith.addf %377, %376 : vector<8x32xf32>
    %379 = arith.divf %377, %378 : vector<8x32xf32>
    %380 = vector.extract_strided_slice %373 {offsets = [0, 32], sizes = [8, 32], strides = [1, 1]} : vector<8x128xf32> to vector<8x32xf32>
    %381 = arith.negf %380 : vector<8x32xf32>
    %382 = math.exp %381 : vector<8x32xf32>
    %cst_88 = arith.constant 1.000000e+00 : f32
    %383 = vector.broadcast %cst_88 : f32 to vector<8x32xf32>
    %384 = arith.addf %383, %382 : vector<8x32xf32>
    %385 = arith.divf %383, %384 : vector<8x32xf32>
    %386 = vector.extract_strided_slice %373 {offsets = [0, 64], sizes = [8, 32], strides = [1, 1]} : vector<8x128xf32> to vector<8x32xf32>
    %387 = math.tanh %386 : vector<8x32xf32>
    %388 = vector.extract_strided_slice %373 {offsets = [0, 96], sizes = [8, 32], strides = [1, 1]} : vector<8x128xf32> to vector<8x32xf32>
    %389 = arith.negf %388 : vector<8x32xf32>
    %390 = math.exp %389 : vector<8x32xf32>
    %cst_89 = arith.constant 1.000000e+00 : f32
    %391 = vector.broadcast %cst_89 : f32 to vector<8x32xf32>
    %392 = arith.addf %391, %390 : vector<8x32xf32>
    %393 = arith.divf %391, %392 : vector<8x32xf32>
    %394 = arith.mulf %385, %333 : vector<8x32xf32>
    %395 = arith.mulf %379, %387 : vector<8x32xf32>
    %396 = arith.addf %394, %395 : vector<8x32xf32>
    %397 = math.tanh %396 : vector<8x32xf32>
    %398 = arith.mulf %393, %397 : vector<8x32xf32>
    %399 = arith.index_cast %339 : i32 to index
    %c0_90 = arith.constant 0 : index
    %400 = vector.load %arg15[%399, %c0_90] : memref<64x32xf32, #tpu.memory_space<vmem>>, vector<8x32xf32>
    tpu.vector_store %arg15[%399, %c0_90], %398 {strides = array<i32>} : memref<64x32xf32, #tpu.memory_space<vmem>>, vector<8x32xf32>,
    %c6_i32 = arith.constant 6 : i32
    %c8_i32_91 = arith.constant 8 : i32
    %401 = arith.muli %c6_i32, %c8_i32_91 : i32
    %402 = tpu.assume_multiple %401, 8 : i32
    %403 = arith.index_cast %402 : i32 to index
    %c0_92 = arith.constant 0 : index
    %404 = vector.load %arg14[%403, %c0_92] : memref<64x128xf32, #tpu.memory_space<vmem>>, vector<8x128xf32>
    %405 = arith.truncf %369 : vector<8x32xf32> to vector<8x32xbf16>
    %cst_93 = arith.constant dense<0.000000e+00> : vector<8x128xf32>
    %406 = tpu.matmul %405, %10, %cst_93 {dimension_numbers = #tpu.dot_dimension_numbers<[1], [0], [0], [1], [0, 0, 1, 1], [], []>} : vector<8x32xbf16>, vector<32x128xbf16>, vector<8x128xf32> -> vector<8x128xf32>
    %407 = arith.addf %404, %406 : vector<8x128xf32>
    %408 = vector.extract_strided_slice %407 {offsets = [0, 0], sizes = [8, 32], strides = [1, 1]} : vector<8x128xf32> to vector<8x32xf32>
    %409 = arith.negf %408 : vector<8x32xf32>
    %410 = math.exp %409 : vector<8x32xf32>
    %cst_94 = arith.constant 1.000000e+00 : f32
    %411 = vector.broadcast %cst_94 : f32 to vector<8x32xf32>
    %412 = arith.addf %411, %410 : vector<8x32xf32>
    %413 = arith.divf %411, %412 : vector<8x32xf32>
    %414 = vector.extract_strided_slice %407 {offsets = [0, 32], sizes = [8, 32], strides = [1, 1]} : vector<8x128xf32> to vector<8x32xf32>
    %415 = arith.negf %414 : vector<8x32xf32>
    %416 = math.exp %415 : vector<8x32xf32>
    %cst_95 = arith.constant 1.000000e+00 : f32
    %417 = vector.broadcast %cst_95 : f32 to vector<8x32xf32>
    %418 = arith.addf %417, %416 : vector<8x32xf32>
    %419 = arith.divf %417, %418 : vector<8x32xf32>
    %420 = vector.extract_strided_slice %407 {offsets = [0, 64], sizes = [8, 32], strides = [1, 1]} : vector<8x128xf32> to vector<8x32xf32>
    %421 = math.tanh %420 : vector<8x32xf32>
    %422 = vector.extract_strided_slice %407 {offsets = [0, 96], sizes = [8, 32], strides = [1, 1]} : vector<8x128xf32> to vector<8x32xf32>
    %423 = arith.negf %422 : vector<8x32xf32>
    %424 = math.exp %423 : vector<8x32xf32>
    %cst_96 = arith.constant 1.000000e+00 : f32
    %425 = vector.broadcast %cst_96 : f32 to vector<8x32xf32>
    %426 = arith.addf %425, %424 : vector<8x32xf32>
    %427 = arith.divf %425, %426 : vector<8x32xf32>
    %428 = arith.mulf %419, %367 : vector<8x32xf32>
    %429 = arith.mulf %413, %421 : vector<8x32xf32>
    %430 = arith.addf %428, %429 : vector<8x32xf32>
    %431 = math.tanh %430 : vector<8x32xf32>
    %432 = arith.mulf %427, %431 : vector<8x32xf32>
    %433 = tpu.concatenate %432, %398 in 1 : vector<8x32xf32>, vector<8x32xf32> -> vector<8x64xf32>
    %434 = arith.truncf %433 : vector<8x64xf32> to vector<8x64xbf16>
    %cst_97 = arith.constant dense<0.000000e+00> : vector<8x128xf32>
    %435 = tpu.matmul %434, %11, %cst_97 {dimension_numbers = #tpu.dot_dimension_numbers<[1], [0], [0], [1], [0, 0, 1, 1], [], []>} : vector<8x64xbf16>, vector<64x128xbf16>, vector<8x128xf32> -> vector<8x128xf32>
    %436 = arith.addf %435, %14 : vector<8x128xf32>
    %437 = vector.extract_strided_slice %436 {offsets = [0, 0], sizes = [8, 32], strides = [1, 1]} : vector<8x128xf32> to vector<8x32xf32>
    %438 = arith.negf %437 : vector<8x32xf32>
    %439 = math.exp %438 : vector<8x32xf32>
    %cst_98 = arith.constant 1.000000e+00 : f32
    %440 = vector.broadcast %cst_98 : f32 to vector<8x32xf32>
    %441 = arith.addf %440, %439 : vector<8x32xf32>
    %442 = arith.divf %440, %441 : vector<8x32xf32>
    %443 = vector.extract_strided_slice %436 {offsets = [0, 32], sizes = [8, 32], strides = [1, 1]} : vector<8x128xf32> to vector<8x32xf32>
    %444 = arith.negf %443 : vector<8x32xf32>
    %445 = math.exp %444 : vector<8x32xf32>
    %cst_99 = arith.constant 1.000000e+00 : f32
    %446 = vector.broadcast %cst_99 : f32 to vector<8x32xf32>
    %447 = arith.addf %446, %445 : vector<8x32xf32>
    %448 = arith.divf %446, %447 : vector<8x32xf32>
    %449 = vector.extract_strided_slice %436 {offsets = [0, 64], sizes = [8, 32], strides = [1, 1]} : vector<8x128xf32> to vector<8x32xf32>
    %450 = math.tanh %449 : vector<8x32xf32>
    %451 = vector.extract_strided_slice %436 {offsets = [0, 96], sizes = [8, 32], strides = [1, 1]} : vector<8x128xf32> to vector<8x32xf32>
    %452 = arith.negf %451 : vector<8x32xf32>
    %453 = math.exp %452 : vector<8x32xf32>
    %cst_100 = arith.constant 1.000000e+00 : f32
    %454 = vector.broadcast %cst_100 : f32 to vector<8x32xf32>
    %455 = arith.addf %454, %453 : vector<8x32xf32>
    %456 = arith.divf %454, %455 : vector<8x32xf32>
    %457 = arith.mulf %448, %396 : vector<8x32xf32>
    %458 = arith.mulf %442, %450 : vector<8x32xf32>
    %459 = arith.addf %457, %458 : vector<8x32xf32>
    %460 = math.tanh %459 : vector<8x32xf32>
    %461 = arith.mulf %456, %460 : vector<8x32xf32>
    %462 = arith.index_cast %402 : i32 to index
    %c0_101 = arith.constant 0 : index
    %463 = vector.load %arg15[%462, %c0_101] : memref<64x32xf32, #tpu.memory_space<vmem>>, vector<8x32xf32>
    tpu.vector_store %arg15[%462, %c0_101], %461 {strides = array<i32>} : memref<64x32xf32, #tpu.memory_space<vmem>>, vector<8x32xf32>,
    %c7_i32 = arith.constant 7 : i32
    %c8_i32_102 = arith.constant 8 : i32
    %464 = arith.muli %c7_i32, %c8_i32_102 : i32
    %465 = tpu.assume_multiple %464, 8 : i32
    %466 = arith.index_cast %465 : i32 to index
    %c0_103 = arith.constant 0 : index
    %467 = vector.load %arg14[%466, %c0_103] : memref<64x128xf32, #tpu.memory_space<vmem>>, vector<8x128xf32>
    %468 = arith.truncf %432 : vector<8x32xf32> to vector<8x32xbf16>
    %cst_104 = arith.constant dense<0.000000e+00> : vector<8x128xf32>
    %469 = tpu.matmul %468, %10, %cst_104 {dimension_numbers = #tpu.dot_dimension_numbers<[1], [0], [0], [1], [0, 0, 1, 1], [], []>} : vector<8x32xbf16>, vector<32x128xbf16>, vector<8x128xf32> -> vector<8x128xf32>
    %470 = arith.addf %467, %469 : vector<8x128xf32>
    %471 = vector.extract_strided_slice %470 {offsets = [0, 0], sizes = [8, 32], strides = [1, 1]} : vector<8x128xf32> to vector<8x32xf32>
    %472 = arith.negf %471 : vector<8x32xf32>
    %473 = math.exp %472 : vector<8x32xf32>
    %cst_105 = arith.constant 1.000000e+00 : f32
    %474 = vector.broadcast %cst_105 : f32 to vector<8x32xf32>
    %475 = arith.addf %474, %473 : vector<8x32xf32>
    %476 = arith.divf %474, %475 : vector<8x32xf32>
    %477 = vector.extract_strided_slice %470 {offsets = [0, 32], sizes = [8, 32], strides = [1, 1]} : vector<8x128xf32> to vector<8x32xf32>
    %478 = arith.negf %477 : vector<8x32xf32>
    %479 = math.exp %478 : vector<8x32xf32>
    %cst_106 = arith.constant 1.000000e+00 : f32
    %480 = vector.broadcast %cst_106 : f32 to vector<8x32xf32>
    %481 = arith.addf %480, %479 : vector<8x32xf32>
    %482 = arith.divf %480, %481 : vector<8x32xf32>
    %483 = vector.extract_strided_slice %470 {offsets = [0, 64], sizes = [8, 32], strides = [1, 1]} : vector<8x128xf32> to vector<8x32xf32>
    %484 = math.tanh %483 : vector<8x32xf32>
    %485 = vector.extract_strided_slice %470 {offsets = [0, 96], sizes = [8, 32], strides = [1, 1]} : vector<8x128xf32> to vector<8x32xf32>
    %486 = arith.negf %485 : vector<8x32xf32>
    %487 = math.exp %486 : vector<8x32xf32>
    %cst_107 = arith.constant 1.000000e+00 : f32
    %488 = vector.broadcast %cst_107 : f32 to vector<8x32xf32>
    %489 = arith.addf %488, %487 : vector<8x32xf32>
    %490 = arith.divf %488, %489 : vector<8x32xf32>
    %491 = arith.mulf %482, %430 : vector<8x32xf32>
    %492 = arith.mulf %476, %484 : vector<8x32xf32>
    %493 = arith.addf %491, %492 : vector<8x32xf32>
    %494 = math.tanh %493 : vector<8x32xf32>
    %495 = arith.mulf %490, %494 : vector<8x32xf32>
    %496 = tpu.concatenate %495, %461 in 1 : vector<8x32xf32>, vector<8x32xf32> -> vector<8x64xf32>
    %497 = arith.truncf %496 : vector<8x64xf32> to vector<8x64xbf16>
    %cst_108 = arith.constant dense<0.000000e+00> : vector<8x128xf32>
    %498 = tpu.matmul %497, %11, %cst_108 {dimension_numbers = #tpu.dot_dimension_numbers<[1], [0], [0], [1], [0, 0, 1, 1], [], []>} : vector<8x64xbf16>, vector<64x128xbf16>, vector<8x128xf32> -> vector<8x128xf32>
    %499 = arith.addf %498, %14 : vector<8x128xf32>
    %500 = vector.extract_strided_slice %499 {offsets = [0, 0], sizes = [8, 32], strides = [1, 1]} : vector<8x128xf32> to vector<8x32xf32>
    %501 = arith.negf %500 : vector<8x32xf32>
    %502 = math.exp %501 : vector<8x32xf32>
    %cst_109 = arith.constant 1.000000e+00 : f32
    %503 = vector.broadcast %cst_109 : f32 to vector<8x32xf32>
    %504 = arith.addf %503, %502 : vector<8x32xf32>
    %505 = arith.divf %503, %504 : vector<8x32xf32>
    %506 = vector.extract_strided_slice %499 {offsets = [0, 32], sizes = [8, 32], strides = [1, 1]} : vector<8x128xf32> to vector<8x32xf32>
    %507 = arith.negf %506 : vector<8x32xf32>
    %508 = math.exp %507 : vector<8x32xf32>
    %cst_110 = arith.constant 1.000000e+00 : f32
    %509 = vector.broadcast %cst_110 : f32 to vector<8x32xf32>
    %510 = arith.addf %509, %508 : vector<8x32xf32>
    %511 = arith.divf %509, %510 : vector<8x32xf32>
    %512 = vector.extract_strided_slice %499 {offsets = [0, 64], sizes = [8, 32], strides = [1, 1]} : vector<8x128xf32> to vector<8x32xf32>
    %513 = math.tanh %512 : vector<8x32xf32>
    %514 = vector.extract_strided_slice %499 {offsets = [0, 96], sizes = [8, 32], strides = [1, 1]} : vector<8x128xf32> to vector<8x32xf32>
    %515 = arith.negf %514 : vector<8x32xf32>
    %516 = math.exp %515 : vector<8x32xf32>
    %cst_111 = arith.constant 1.000000e+00 : f32
    %517 = vector.broadcast %cst_111 : f32 to vector<8x32xf32>
    %518 = arith.addf %517, %516 : vector<8x32xf32>
    %519 = arith.divf %517, %518 : vector<8x32xf32>
    %520 = arith.mulf %511, %459 : vector<8x32xf32>
    %521 = arith.mulf %505, %513 : vector<8x32xf32>
    %522 = arith.addf %520, %521 : vector<8x32xf32>
    %523 = math.tanh %522 : vector<8x32xf32>
    %524 = arith.mulf %519, %523 : vector<8x32xf32>
    %525 = arith.index_cast %465 : i32 to index
    %c0_112 = arith.constant 0 : index
    %526 = vector.load %arg15[%525, %c0_112] : memref<64x32xf32, #tpu.memory_space<vmem>>, vector<8x32xf32>
    tpu.vector_store %arg15[%525, %c0_112], %524 {strides = array<i32>} : memref<64x32xf32, #tpu.memory_space<vmem>>, vector<8x32xf32>,
    %c8_i32_113 = arith.constant 8 : i32
    %c0_114 = arith.constant 0 : index
    %c0_115 = arith.constant 0 : index
    %c0_116 = arith.constant 0 : index
    %527 = vector.load %arg16[%c0_114, %c0_115, %c0_116] : memref<2x8x32xf32, #tpu.memory_space<vmem>>, vector<1x8x32xf32>
    %528 = vector.shape_cast %527 : vector<1x8x32xf32> to vector<8x32xf32>
    %529 = vector.shape_cast %495 : vector<8x32xf32> to vector<1x8x32xf32>
    tpu.vector_store %arg16[%c0_114, %c0_115, %c0_116], %529 {strides = array<i32>} : memref<2x8x32xf32, #tpu.memory_space<vmem>>, vector<1x8x32xf32>,
    %c1_117 = arith.constant 1 : index
    %c0_118 = arith.constant 0 : index
    %c0_119 = arith.constant 0 : index
    %530 = vector.load %arg16[%c1_117, %c0_118, %c0_119] : memref<2x8x32xf32, #tpu.memory_space<vmem>>, vector<1x8x32xf32>
    %531 = vector.shape_cast %530 : vector<1x8x32xf32> to vector<8x32xf32>
    %532 = vector.shape_cast %524 : vector<8x32xf32> to vector<1x8x32xf32>
    tpu.vector_store %arg16[%c1_117, %c0_118, %c0_119], %532 {strides = array<i32>} : memref<2x8x32xf32, #tpu.memory_space<vmem>>, vector<1x8x32xf32>,
    %c0_120 = arith.constant 0 : index
    %c0_121 = arith.constant 0 : index
    %c0_122 = arith.constant 0 : index
    %533 = vector.load %arg17[%c0_120, %c0_121, %c0_122] : memref<2x8x32xf32, #tpu.memory_space<vmem>>, vector<1x8x32xf32>
    %534 = vector.shape_cast %533 : vector<1x8x32xf32> to vector<8x32xf32>
    %535 = vector.shape_cast %493 : vector<8x32xf32> to vector<1x8x32xf32>
    tpu.vector_store %arg17[%c0_120, %c0_121, %c0_122], %535 {strides = array<i32>} : memref<2x8x32xf32, #tpu.memory_space<vmem>>, vector<1x8x32xf32>,
    %c1_123 = arith.constant 1 : index
    %c0_124 = arith.constant 0 : index
    %c0_125 = arith.constant 0 : index
    %536 = vector.load %arg17[%c1_123, %c0_124, %c0_125] : memref<2x8x32xf32, #tpu.memory_space<vmem>>, vector<1x8x32xf32>
    %537 = vector.shape_cast %536 : vector<1x8x32xf32> to vector<8x32xf32>
    %538 = vector.shape_cast %522 : vector<8x32xf32> to vector<1x8x32xf32>
    tpu.vector_store %arg17[%c1_123, %c0_124, %c0_125], %538 {strides = array<i32>} : memref<2x8x32xf32, #tpu.memory_space<vmem>>, vector<1x8x32xf32>,
    %c0_126 = arith.constant 0 : index
    %c0_127 = arith.constant 0 : index
    %539 = vector.load %arg15[%c0_126, %c0_127] : memref<64x32xf32, #tpu.memory_space<vmem>>, vector<64x32xf32>
    %540 = arith.truncf %539 : vector<64x32xf32> to vector<64x32xbf16>
    %c0_128 = arith.constant 0 : index
    %c0_129 = arith.constant 0 : index
    %541 = vector.load %arg9[%c0_128, %c0_129] : memref<32x128xbf16, #tpu.memory_space<vmem>>, vector<32x128xbf16>
    %cst_130 = arith.constant dense<0.000000e+00> : vector<64x128xf32>
    %542 = tpu.matmul %540, %541, %cst_130 {dimension_numbers = #tpu.dot_dimension_numbers<[1], [0], [0], [1], [0, 0, 1, 1], [], []>} : vector<64x32xbf16>, vector<32x128xbf16>, vector<64x128xf32> -> vector<64x128xf32>
    %c0_131 = arith.constant 0 : index
    %c0_132 = arith.constant 0 : index
    %543 = vector.load %arg10[%c0_131, %c0_132] : memref<1x128xf32, #tpu.memory_space<vmem>>, vector<1x128xf32>
    %544 = vector.broadcast %543 : vector<1x128xf32> to vector<64x128xf32>
    %545 = arith.addf %542, %544 : vector<64x128xf32>
    %c0_133 = arith.constant 0 : index
    %c0_134 = arith.constant 0 : index
    %546 = vector.load %arg11[%c0_133, %c0_134] : memref<64x128xf32, #tpu.memory_space<vmem>>, vector<64x128xf32>
    tpu.vector_store %arg11[%c0_133, %c0_134], %545 {strides = array<i32>} : memref<64x128xf32, #tpu.memory_space<vmem>>, vector<64x128xf32>,
    %c0_i32_135 = arith.constant 0 : i32
    %547 = arith.cmpi eq, %arg0, %c0_i32_135 : i32
    %548 = arith.extui %547 : i1 to i32
    %c0_i32_136 = arith.constant 0 : i32
    %549 = arith.cmpi ne, %548, %c0_i32_136 : i32
    scf.if %549 {
      %c0_137 = arith.constant 0 : index
      %c0_138 = arith.constant 0 : index
      %c0_139 = arith.constant 0 : index
      %550 = vector.load %arg16[%c0_137, %c0_138, %c0_139] : memref<2x8x32xf32, #tpu.memory_space<vmem>>, vector<2x8x32xf32>
      %c0_140 = arith.constant 0 : index
      %c0_141 = arith.constant 0 : index
      %c0_142 = arith.constant 0 : index
      %551 = vector.load %arg12[%c0_140, %c0_141, %c0_142] : memref<2x8x32xf32, #tpu.memory_space<vmem>>, vector<2x8x32xf32>
      tpu.vector_store %arg12[%c0_140, %c0_141, %c0_142], %550 {strides = array<i32>} : memref<2x8x32xf32, #tpu.memory_space<vmem>>, vector<2x8x32xf32>,
      %c0_143 = arith.constant 0 : index
      %c0_144 = arith.constant 0 : index
      %c0_145 = arith.constant 0 : index
      %552 = vector.load %arg17[%c0_143, %c0_144, %c0_145] : memref<2x8x32xf32, #tpu.memory_space<vmem>>, vector<2x8x32xf32>
      %c0_146 = arith.constant 0 : index
      %c0_147 = arith.constant 0 : index
      %c0_148 = arith.constant 0 : index
      %553 = vector.load %arg13[%c0_146, %c0_147, %c0_148] : memref<2x8x32xf32, #tpu.memory_space<vmem>>, vector<2x8x32xf32>
      tpu.vector_store %arg13[%c0_146, %c0_147, %c0_148], %552 {strides = array<i32>} : memref<2x8x32xf32, #tpu.memory_space<vmem>>, vector<2x8x32xf32>,
    } else {
    }
    return
  }
  func.func @transform_0(%arg0: i32) -> (i32, i32) {
    %c0_i32 = arith.constant 0 : i32
    %c0_i32_0 = arith.constant 0 : i32
    return %arg0, %c0_i32 : i32, i32
  }
  func.func @transform_1(%arg0: i32) -> (i32, i32, i32) {
    %c0_i32 = arith.constant 0 : i32
    %c0_i32_0 = arith.constant 0 : i32
    %c0_i32_1 = arith.constant 0 : i32
    %c0_i32_2 = arith.constant 0 : i32
    return %c0_i32, %c0_i32_0, %c0_i32_1 : i32, i32, i32
  }
  func.func @transform_2(%arg0: i32) -> (i32, i32, i32) {
    %c0_i32 = arith.constant 0 : i32
    %c0_i32_0 = arith.constant 0 : i32
    %c0_i32_1 = arith.constant 0 : i32
    %c0_i32_2 = arith.constant 0 : i32
    return %c0_i32, %c0_i32_0, %c0_i32_1 : i32, i32, i32
  }
  func.func @transform_3(%arg0: i32) -> (i32, i32) {
    %c0_i32 = arith.constant 0 : i32
    %c0_i32_0 = arith.constant 0 : i32
    %c0_i32_1 = arith.constant 0 : i32
    return %c0_i32, %c0_i32_0 : i32, i32
  }
  func.func @transform_4(%arg0: i32) -> (i32, i32) {
    %c0_i32 = arith.constant 0 : i32
    %c0_i32_0 = arith.constant 0 : i32
    %c0_i32_1 = arith.constant 0 : i32
    return %c0_i32, %c0_i32_0 : i32, i32
  }
  func.func @transform_5(%arg0: i32) -> (i32, i32) {
    %c0_i32 = arith.constant 0 : i32
    %c0_i32_0 = arith.constant 0 : i32
    %c0_i32_1 = arith.constant 0 : i32
    return %c0_i32, %c0_i32_0 : i32, i32
  }
  func.func @transform_6(%arg0: i32) -> (i32, i32) {
    %c0_i32 = arith.constant 0 : i32
    %c0_i32_0 = arith.constant 0 : i32
    %c0_i32_1 = arith.constant 0 : i32
    return %c0_i32, %c0_i32_0 : i32, i32
  }
  func.func @transform_7(%arg0: i32) -> (i32, i32) {
    %c0_i32 = arith.constant 0 : i32
    %c0_i32_0 = arith.constant 0 : i32
    %c0_i32_1 = arith.constant 0 : i32
    return %c0_i32, %c0_i32_0 : i32, i32
  }
  func.func @transform_8(%arg0: i32) -> (i32, i32) {
    %c0_i32 = arith.constant 0 : i32
    %c0_i32_0 = arith.constant 0 : i32
    %c0_i32_1 = arith.constant 0 : i32
    return %c0_i32, %c0_i32_0 : i32, i32
  }
  func.func @transform_9(%arg0: i32) -> (i32, i32) {
    %c0_i32 = arith.constant 0 : i32
    %c0_i32_0 = arith.constant 0 : i32
    %c0_i32_1 = arith.constant 0 : i32
    return %c0_i32, %c0_i32_0 : i32, i32
  }
  func.func @transform_10(%arg0: i32) -> (i32, i32) {
    %c0_i32 = arith.constant 0 : i32
    %c0_i32_0 = arith.constant 0 : i32
    return %arg0, %c0_i32 : i32, i32
  }
  func.func @transform_11(%arg0: i32) -> (i32, i32, i32) {
    %c0_i32 = arith.constant 0 : i32
    %c0_i32_0 = arith.constant 0 : i32
    %c0_i32_1 = arith.constant 0 : i32
    %c0_i32_2 = arith.constant 0 : i32
    return %c0_i32, %c0_i32_0, %c0_i32_1 : i32, i32, i32
  }
  func.func @transform_12(%arg0: i32) -> (i32, i32, i32) {
    %c0_i32 = arith.constant 0 : i32
    %c0_i32_0 = arith.constant 0 : i32
    %c0_i32_1 = arith.constant 0 : i32
    %c0_i32_2 = arith.constant 0 : i32
    return %c0_i32, %c0_i32_0, %c0_i32_1 : i32, i32, i32
  }
}

</mosaic_0001>

<llo_original>
// kernel: tpu_custom_call.1
$region0: #{tpu_custom_call.1}
  #allocation0 [shape = 'u32[]', space=smem, size = 0x4, offset = 0x4, fixed_abs, tag = 'smem constant byte address 0x4 - core index']
  #allocation1 [shape = 'u32[72,128]{1,0:T(1,128)}', space=vmem, size = 0x9000, scoped, tag = 'internal scratch']
  #allocation2 [shape = 'f32[64,128]{1,0:T(8,128)}', space=vmem, size = 0x8000, scoped, tag = 'scratch operand']
  #allocation3 [shape = 'f32[64,32]{1,0:T(8,128)}', space=vmem, size = 0x8000, scoped, tag = 'scratch operand']
  #allocation4 [shape = 'f32[2,8,32]{2,1,0:T(8,128)}', space=vmem, size = 0x2000, scoped, tag = 'scratch operand']
  #allocation5 [shape = 'f32[2,8,32]{2,1,0:T(8,128)}', space=vmem, size = 0x2000, scoped, tag = 'scratch operand']
  %s0 = inlined_call_operand.hbm [shape: bf16[64,128], index: 0, kind: input, shape index: {}]
  %s1 = inlined_call_operand.hbm [shape: f32[2,8,32], index: 1, kind: input, shape index: {}]
  %s2 = inlined_call_operand.hbm [shape: f32[2,8,32], index: 2, kind: input, shape index: {}]
  %s3 = inlined_call_operand.hbm [shape: bf16[128,128], index: 3, kind: input, shape index: {}]
  %s4 = inlined_call_operand.hbm [shape: bf16[32,128], index: 4, kind: input, shape index: {}]
  %s5 = inlined_call_operand.vmem [shape: f32[1,128], index: 5, kind: input, shape index: {}]
  %s6 = inlined_call_operand.hbm [shape: bf16[64,128], index: 6, kind: input, shape index: {}]
  %s7 = inlined_call_operand.vmem [shape: f32[1,128], index: 7, kind: input, shape index: {}]
  %s8 = inlined_call_operand.hbm [shape: bf16[32,128], index: 8, kind: input, shape index: {}]
  %s9 = inlined_call_operand.vmem [shape: f32[1,128], index: 9, kind: input, shape index: {}]
  %s10 = inlined_call_operand.hbm [shape: f32[64,128], index: 10, kind: output, shape index: {0}]
  %s11 = inlined_call_operand.hbm [shape: f32[2,8,32], index: 11, kind: output, shape index: {1}]
  %s12 = inlined_call_operand.hbm [shape: f32[2,8,32], index: 12, kind: output, shape index: {2}]
  %13 = xla_tuple %s10, %s11, %s12
  %s14 = sld [smem:[#allocation0]]
  $region102: #{tpu_custom_call.1} parent=0
    _
  %s16 = ssub.s32 1, %s14
  %s17 = scalar_select 0, %s16, %s14
  $region1: #{tpu_custom_call.1} parent=0
    #allocation6 [shape = 'u8[16384]{0}', space=vmem, size = 0x4000, scoped, tag = 'input window, operand 0, single buffered']
    #allocation7 [shape = 's32[1]{0}', space=sflag, size = 0x4, scoped, tag = 'scoped memory for tpu_custom_call.1']
    #allocation8 [shape = 's32[1]{0}', space=sflag, size = 0x4, scoped, tag = 'scoped memory for tpu_custom_call.1']
    #allocation9 [shape = 'u8[8192]{0}', space=vmem, size = 0x2000, scoped, tag = 'input window, operand 1, single buffered']
    #allocation10 [shape = 's32[1]{0}', space=sflag, size = 0x4, scoped, tag = 'scoped memory for tpu_custom_call.1']
    #allocation11 [shape = 'u8[8192]{0}', space=vmem, size = 0x2000, scoped, tag = 'input window, operand 2, single buffered']
    #allocation12 [shape = 'u8[32768]{0}', space=vmem, size = 0x8000, scoped, tag = 'input window, operand 3, single buffered']
    #allocation13 [shape = 's32[1]{0}', space=sflag, size = 0x4, scoped, tag = 'scoped memory for tpu_custom_call.1']
    #allocation14 [shape = 'u8[8192]{0}', space=vmem, size = 0x2000, scoped, tag = 'input window, operand 4, single buffered']
    #allocation15 [shape = 'u8[16384]{0}', space=vmem, size = 0x4000, scoped, tag = 'input window, operand 6, single buffered']
    #allocation16 [shape = 's32[1]{0}', space=sflag, size = 0x4, scoped, tag = 'scoped memory for tpu_custom_call.1']
    #allocation17 [shape = 'u8[8192]{0}', space=vmem, size = 0x2000, scoped, tag = 'input window, operand 8, single buffered']
    #allocation18 [shape = 'u8[32768]{0}', space=vmem, size = 0x8000, scoped, tag = 'output window, operand 0, single buffered']
    #allocation19 [shape = 'u8[8192]{0}', space=vmem, size = 0x2000, scoped, tag = 'output window, operand 1, single buffered']
    #allocation20 [shape = 's32[1]{0}', space=sflag, size = 0x4, scoped, tag = 'scoped memory for tpu_custom_call.1']
    #allocation21 [shape = 'u8[8192]{0}', space=vmem, size = 0x2000, scoped, tag = 'output window, operand 2, single buffered']
    %18 = vsyncpa [#allocation7], 0
    %19 = vsyncpa [#allocation10], 0
    %20 = vsyncpa [#allocation13], 0
    %21 = vsyncpa [#allocation16], 0
    %22 = vsyncpa [#allocation8], 0
    %23 = vsyncpa [#allocation20], 0
    // Predicated region
    $region2: #{tpu_custom_call.1} parent=1 // pred_check
      _
    $region3: #{tpu_custom_call.1} parent=1 // pred_check_branch
      %25 = sbr.rel (0) target = $region5
    $region4: #{tpu_custom_call.1} parent=1 // pred_region
      %27 = vsyncadd [#allocation7], 0
      %s28 = sshll.u32 %s0, 4
      %s29 = int_to_ptr.hbm [resolvable:$true] %s28
      %s30 = sshll.u32 [#allocation6], 4
      %s31 = int_to_ptr.vmem [resolvable:$true] %s30
      %36 = dma.hbm_to_vmem [thread:$0]  %s29, 512, %s31, [#allocation7], 64, 64, 4
    $region5: #{tpu_custom_call.1} parent=1 // pred_fallthru
      _
    // Predicated region
    $region6: #{tpu_custom_call.1} parent=1 // pred_check
      _
    $region7: #{tpu_custom_call.1} parent=1 // pred_check_branch
      %38 = sbr.rel (0) target = $region9
    $region8: #{tpu_custom_call.1} parent=1 // pred_region
      %40 = vsyncadd [#allocation10], 0
      %s41 = sshll.u32 %s1, 4
      %s42 = int_to_ptr.hbm [resolvable:$true] %s41
      %s43 = sshll.u32 [#allocation9], 4
      %s44 = int_to_ptr.vmem [resolvable:$true] %s43
      %49 = dma.hbm_to_vmem [thread:$0]  %s42, 256, %s44, [#allocation10], 128, 128, 8
    $region9: #{tpu_custom_call.1} parent=1 // pred_fallthru
      _
    // Predicated region
    $region10: #{tpu_custom_call.1} parent=1 // pred_check
      _
    $region11: #{tpu_custom_call.1} parent=1 // pred_check_branch
      %51 = sbr.rel (0) target = $region13
    $region12: #{tpu_custom_call.1} parent=1 // pred_region
      %53 = vsyncadd [#allocation10], 0
      %s54 = sshll.u32 %s2, 4
      %s55 = int_to_ptr.hbm [resolvable:$true] %s54
      %s56 = sshll.u32 [#allocation11], 4
      %s57 = int_to_ptr.vmem [resolvable:$true] %s56
      %62 = dma.hbm_to_vmem [thread:$0]  %s55, 256, %s57, [#allocation10], 128, 128, 8
    $region13: #{tpu_custom_call.1} parent=1 // pred_fallthru
      _
    // Predicated region
    $region14: #{tpu_custom_call.1} parent=1 // pred_check
      _
    $region15: #{tpu_custom_call.1} parent=1 // pred_check_branch
      %64 = sbr.rel (0) target = $region17
    $region16: #{tpu_custom_call.1} parent=1 // pred_region
      %66 = vsyncadd [#allocation13], 0
      %s67 = sshll.u32 %s3, 4
      %s68 = int_to_ptr.hbm [resolvable:$true] %s67
      %s69 = sshll.u32 [#allocation12], 4
      %s70 = int_to_ptr.vmem [resolvable:$true] %s69
      %75 = dma.hbm_to_vmem [thread:$0]  %s68, 1024, %s70, [#allocation13], 64, 64, 4
    $region17: #{tpu_custom_call.1} parent=1 // pred_fallthru
      _
    // Predicated region
    $region18: #{tpu_custom_call.1} parent=1 // pred_check
      _
    $region19: #{tpu_custom_call.1} parent=1 // pred_check_branch
      %77 = sbr.rel (0) target = $region21
    $region20: #{tpu_custom_call.1} parent=1 // pred_region
      %79 = vsyncadd [#allocation13], 0
      %s80 = sshll.u32 %s4, 4
      %s81 = int_to_ptr.hbm [resolvable:$true] %s80
      %s82 = sshll.u32 [#allocation14], 4
      %s83 = int_to_ptr.vmem [resolvable:$true] %s82
      %88 = dma.hbm_to_vmem [thread:$0]  %s81, 256, %s83, [#allocation13], 64, 64, 4
    $region21: #{tpu_custom_call.1} parent=1 // pred_fallthru
      _
    // Predicated region
    $region22: #{tpu_custom_call.1} parent=1 // pred_check
      _
    $region23: #{tpu_custom_call.1} parent=1 // pred_check_branch
      %90 = sbr.rel (0) target = $region25
    $region24: #{tpu_custom_call.1} parent=1 // pred_region
      _
    $region25: #{tpu_custom_call.1} parent=1 // pred_fallthru
      _
    // Predicated region
    $region26: #{tpu_custom_call.1} parent=1 // pred_check
      _
    $region27: #{tpu_custom_call.1} parent=1 // pred_check_branch
      %92 = sbr.rel (0) target = $region29
    $region28: #{tpu_custom_call.1} parent=1 // pred_region
      %94 = vsyncadd [#allocation16], 0
      %s95 = sshll.u32 %s6, 4
      %s96 = int_to_ptr.hbm [resolvable:$true] %s95
      %s97 = sshll.u32 [#allocation15], 4
      %s98 = int_to_ptr.vmem [resolvable:$true] %s97
      %103 = dma.hbm_to_vmem [thread:$0]  %s96, 512, %s98, [#allocation16], 64, 64, 4
    $region29: #{tpu_custom_call.1} parent=1 // pred_fallthru
      _
    // Predicated region
    $region30: #{tpu_custom_call.1} parent=1 // pred_check
      _
    $region31: #{tpu_custom_call.1} parent=1 // pred_check_branch
      %105 = sbr.rel (0) target = $region33
    $region32: #{tpu_custom_call.1} parent=1 // pred_region
      _
    $region33: #{tpu_custom_call.1} parent=1 // pred_fallthru
      _
    // Predicated region
    $region34: #{tpu_custom_call.1} parent=1 // pred_check
      _
    $region35: #{tpu_custom_call.1} parent=1 // pred_check_branch
      %107 = sbr.rel (0) target = $region37
    $region36: #{tpu_custom_call.1} parent=1 // pred_region
      %109 = vsyncadd [#allocation16], 0
      %s110 = sshll.u32 %s8, 4
      %s111 = int_to_ptr.hbm [resolvable:$true] %s110
      %s112 = sshll.u32 [#allocation17], 4
      %s113 = int_to_ptr.vmem [resolvable:$true] %s112
      %118 = dma.hbm_to_vmem [thread:$0]  %s111, 256, %s113, [#allocation16], 64, 64, 4
    $region37: #{tpu_custom_call.1} parent=1 // pred_fallthru
      _
    // Predicated region
    $region38: #{tpu_custom_call.1} parent=1 // pred_check
      _
    $region39: #{tpu_custom_call.1} parent=1 // pred_check_branch
      %120 = sbr.rel (0) target = $region41
    $region40: #{tpu_custom_call.1} parent=1 // pred_region
      _
    $region41: #{tpu_custom_call.1} parent=1 // pred_fallthru
      _
    // Predicated region
    $region42: #{tpu_custom_call.1} parent=1 // pred_check
      _
    $region43: #{tpu_custom_call.1} parent=1 // pred_check_branch
      %122 = sbr.rel (0) target = $region45
    $region44: #{tpu_custom_call.1} parent=1 // pred_region
      %124 = dma.done [#allocation7], 512
    $region45: #{tpu_custom_call.1} parent=1 // pred_fallthru
      _
    // Predicated region
    $region46: #{tpu_custom_call.1} parent=1 // pred_check
      _
    $region47: #{tpu_custom_call.1} parent=1 // pred_check_branch
      %126 = sbr.rel (0) target = $region49
    $region48: #{tpu_custom_call.1} parent=1 // pred_region
      %128 = dma.done [#allocation10], 256
    $region49: #{tpu_custom_call.1} parent=1 // pred_fallthru
      _
    // Predicated region
    $region50: #{tpu_custom_call.1} parent=1 // pred_check
      _
    $region51: #{tpu_custom_call.1} parent=1 // pred_check_branch
      %130 = sbr.rel (0) target = $region53
    $region52: #{tpu_custom_call.1} parent=1 // pred_region
      %132 = dma.done [#allocation10], 256
    $region53: #{tpu_custom_call.1} parent=1 // pred_fallthru
      _
    // Predicated region
    $region54: #{tpu_custom_call.1} parent=1 // pred_check
      _
    $region55: #{tpu_custom_call.1} parent=1 // pred_check_branch
      %134 = sbr.rel (0) target = $region57
    $region56: #{tpu_custom_call.1} parent=1 // pred_region
      %136 = dma.done [#allocation13], 1024
    $region57: #{tpu_custom_call.1} parent=1 // pred_fallthru
      _
    // Predicated region
    $region58: #{tpu_custom_call.1} parent=1 // pred_check
      _
    $region59: #{tpu_custom_call.1} parent=1 // pred_check_branch
      %138 = sbr.rel (0) target = $region61
    $region60: #{tpu_custom_call.1} parent=1 // pred_region
      %140 = dma.done [#allocation13], 256
    $region61: #{tpu_custom_call.1} parent=1 // pred_fallthru
      _
    // Predicated region
    $region62: #{tpu_custom_call.1} parent=1 // pred_check
      _
    $region63: #{tpu_custom_call.1} parent=1 // pred_check_branch
      %142 = sbr.rel (0) target = $region65
    $region64: #{tpu_custom_call.1} parent=1 // pred_region
      %144 = dma.done [#allocation16], 512
    $region65: #{tpu_custom_call.1} parent=1 // pred_fallthru
      _
    // Predicated region
    $region66: #{tpu_custom_call.1} parent=1 // pred_check
      _
    $region67: #{tpu_custom_call.1} parent=1 // pred_check_branch
      %146 = sbr.rel (0) target = $region69
    $region68: #{tpu_custom_call.1} parent=1 // pred_region
      %148 = dma.done [#allocation16], 256
    $region69: #{tpu_custom_call.1} parent=1 // pred_fallthru
      _
    %p150 = scmp.eq.s32.totalorder 0, 0
    // Predicated region
    $region70: #{tpu_custom_call.1} parent=1 // pred_check
      %p151 = pneg %p150
    $region71: #{tpu_custom_call.1} parent=1 // pred_check_branch
      %153 = sbr.rel (%p151) target = $region73
    $region72: #{tpu_custom_call.1} parent=1 // pred_region
      %v154 = vld [vmem:[#allocation9] sm:$0xff]
      %v155 = vld [vmem:[#allocation9 + $0x8] sm:$0xff]
      %vm156 = vcmask 261120
      %157 = vst.msk [vmem:[#allocation4] sm:$0xff] %vm156, %v154
      %158 = vst.msk [vmem:[#allocation4 + $0x8] sm:$0xff] %vm156, %v155
      %v159 = vld [vmem:[#allocation11] sm:$0xff]
      %v160 = vld [vmem:[#allocation11 + $0x8] sm:$0xff]
      %161 = vst.msk [vmem:[#allocation5] sm:$0xff] %vm156, %v159
      %162 = vst.msk [vmem:[#allocation5 + $0x8] sm:$0xff] %vm156, %v160
    $region73: #{tpu_custom_call.1} parent=1 // pred_fallthru
      _
    %v163 = vld [vmem:[#allocation6] sm:$0xf]
    %v164 = vld [vmem:[#allocation6 + $0x4] sm:$0xf]
    %v165 = vld [vmem:[#allocation6 + $0x8] sm:$0xf]
    %v166 = vld [vmem:[#allocation6 + $0xc] sm:$0xf]
    %v167 = vld [vmem:[#allocation6 + $0x10] sm:$0xf]
    %v168 = vld [vmem:[#allocation6 + $0x14] sm:$0xf]
    %v169 = vld [vmem:[#allocation6 + $0x18] sm:$0xf]
    %v170 = vld [vmem:[#allocation6 + $0x1c] sm:$0xf]
    %v171 = vld [vmem:[#allocation12] sm:$0xf]
    %v172 = vld [vmem:[#allocation12 + $0x4] sm:$0xf]
    %v173 = vld [vmem:[#allocation12 + $0x8] sm:$0xf]
    %v174 = vld [vmem:[#allocation12 + $0xc] sm:$0xf]
    %v175 = vld [vmem:[#allocation12 + $0x10] sm:$0xf]
    %v176 = vld [vmem:[#allocation12 + $0x14] sm:$0xf]
    %v177 = vld [vmem:[#allocation12 + $0x18] sm:$0xf]
    %v178 = vld [vmem:[#allocation12 + $0x1c] sm:$0xf]
    %v179 = vld [vmem:[#allocation12 + $0x20] sm:$0xf]
    %v180 = vld [vmem:[#allocation12 + $0x24] sm:$0xf]
    %v181 = vld [vmem:[#allocation12 + $0x28] sm:$0xf]
    %v182 = vld [vmem:[#allocation12 + $0x2c] sm:$0xf]
    %v183 = vld [vmem:[#allocation12 + $0x30] sm:$0xf]
    %v184 = vld [vmem:[#allocation12 + $0x34] sm:$0xf]
    %v185 = vld [vmem:[#allocation12 + $0x38] sm:$0xf]
    %v186 = vld [vmem:[#allocation12 + $0x3c] sm:$0xf]
    %v187 = vld [vmem:[%s5] sm:$0x1]
    %v189 = vperm.slane %v187, 0
    %v199 = vunpack.c.l.b16 %v163
    %v200 = vunpack.c.l.b16 %v164
    %v201 = vunpack.c.l.b16 %v165
    %v202 = vunpack.c.l.b16 %v166
    %v203 = vunpack.c.l.b16 %v167
    %v204 = vunpack.c.l.b16 %v168
    %v205 = vunpack.c.l.b16 %v169
    %v206 = vunpack.c.l.b16 %v170
    %v207 = vpack.c.b16 %v200, %v199
    %v208 = vpack.c.b16 %v202, %v201
    %v209 = vpack.c.b16 %v204, %v203
    %v210 = vpack.c.b16 %v206, %v205
    %v231 = vunpack.c.l.b16 %v171
    %v232 = vunpack.c.l.b16 %v172
    %v233 = vunpack.c.l.b16 %v173
    %v234 = vunpack.c.l.b16 %v174
    %v235 = vunpack.c.l.b16 %v175
    %v236 = vunpack.c.l.b16 %v176
    %v237 = vunpack.c.l.b16 %v177
    %v238 = vunpack.c.l.b16 %v178
    %v239 = vunpack.c.l.b16 %v179
    %v240 = vunpack.c.l.b16 %v180
    %v241 = vunpack.c.l.b16 %v181
    %v242 = vunpack.c.l.b16 %v182
    %v243 = vunpack.c.l.b16 %v183
    %v244 = vunpack.c.l.b16 %v184
    %v245 = vunpack.c.l.b16 %v185
    %v246 = vunpack.c.l.b16 %v186
    %v247 = vpack.c.b16 %v232, %v231
    %v248 = vpack.c.b16 %v234, %v233
    %v249 = vpack.c.b16 %v236, %v235
    %v250 = vpack.c.b16 %v238, %v237
    %v251 = vpack.c.b16 %v240, %v239
    %v252 = vpack.c.b16 %v242, %v241
    %v253 = vpack.c.b16 %v244, %v243
    %v254 = vpack.c.b16 %v246, %v245
    %263 = vmatpush.bf16.msra.mxu0 %v254
    %264 = vmatpush.bf16.msra.mxu0 %v253
    %265 = vmatpush.bf16.msra.mxu0 %v252
    %266 = vmatpush.bf16.msra.mxu0 %v251
    %267 = vmatpush.bf16.msra.mxu0 %v250
    %268 = vmatpush.bf16.msra.mxu0 %v249
    %269 = vmatpush.bf16.msra.mxu0 %v248
    %270 = vmatpush.bf16.msra.mxu0 %v247
    %271 = vmatmul.bf16.gmra.mxu0 %v207
    %v272 = vpop.f32.mrf.mxu0
    %v273 = vadd.f32 %v189, %v272
    %v274 = vpop.f32.mrf.mxu0
    %v275 = vadd.f32 %v189, %v274
    %276 = vmatmul.bf16.gmra.mxu0 %v208
    %v277 = vpop.f32.mrf.mxu0
    %v278 = vadd.f32 %v189, %v277
    %v279 = vpop.f32.mrf.mxu0
    %v280 = vadd.f32 %v189, %v279
    %281 = vmatmul.bf16.gmra.mxu0 %v209
    %v282 = vpop.f32.mrf.mxu0
    %v283 = vadd.f32 %v189, %v282
    %v284 = vpop.f32.mrf.mxu0
    %v285 = vadd.f32 %v189, %v284
    %286 = vmatmul.bf16.gmra.mxu0 %v210
    %v287 = vpop.f32.mrf.mxu0
    %v288 = vadd.f32 %v189, %v287
    %v289 = vpop.f32.mrf.mxu0
    %v290 = vadd.f32 %v189, %v289
    %291 = vdwg.mxu0
    %292 = vst [vmem:[#allocation2] sm:$0xff] %v273
    %293 = vst [vmem:[#allocation2 + $0x8] sm:$0xff] %v275
    %294 = vst [vmem:[#allocation2 + $0x10] sm:$0xff] %v278
    %295 = vst [vmem:[#allocation2 + $0x18] sm:$0xff] %v280
    %296 = vst [vmem:[#allocation2 + $0x20] sm:$0xff] %v283
    %297 = vst [vmem:[#allocation2 + $0x28] sm:$0xff] %v285
    %298 = vst [vmem:[#allocation2 + $0x30] sm:$0xff] %v288
    %299 = vst [vmem:[#allocation2 + $0x38] sm:$0xff] %v290
    %v300 = vld [vmem:[#allocation14] sm:$0xf]
    %v301 = vld [vmem:[#allocation14 + $0x4] sm:$0xf]
    %v302 = vld [vmem:[#allocation14 + $0x8] sm:$0xf]
    %v303 = vld [vmem:[#allocation14 + $0xc] sm:$0xf]
    %v304 = vld [vmem:[#allocation15] sm:$0xf]
    %v305 = vld [vmem:[#allocation15 + $0x4] sm:$0xf]
    %v306 = vld [vmem:[#allocation15 + $0x8] sm:$0xf]
    %v307 = vld [vmem:[#allocation15 + $0xc] sm:$0xf]
    %v308 = vld [vmem:[#allocation15 + $0x10] sm:$0xf]
    %v309 = vld [vmem:[#allocation15 + $0x14] sm:$0xf]
    %v310 = vld [vmem:[#allocation15 + $0x18] sm:$0xf]
    %v311 = vld [vmem:[#allocation15 + $0x1c] sm:$0xf]
    %v312 = vld [vmem:[%s7] sm:$0x1]
    %v314 = vperm.slane %v312, 0
    %v316 = vld [vmem:[#allocation4] sm:$0xff]
    %v317 = vld [vmem:[#allocation5] sm:$0xff]
    %s318 = scalar_lea.vmem [#allocation4], 8
    %v319 = vld [vmem:[%s318] sm:$0xff]
    %s320 = scalar_lea.vmem [#allocation5], 8
    %v321 = vld [vmem:[%s320] sm:$0xff]
    %v322 = vld [vmem:[#allocation2] sm:$0xff]
    %v323 = vpack.c.bf16 %v316, %v316
    %v328 = vunpack.c.l.b16 %v300
    %v329 = vunpack.c.l.b16 %v301
    %v330 = vunpack.c.l.b16 %v302
    %v331 = vunpack.c.l.b16 %v303
    %v332 = vpack.c.b16 %v329, %v328
    %v333 = vpack.c.b16 %v331, %v330
    %vm336 = vcmask 261120
    %v338 = vsel %vm336, %v323, 0
    %340 = vmatpush.bf16.msra.mxu0 0
    %341 = vmatpush.bf16.msra.mxu0 0
    %342 = vmatpush.bf16.msra.mxu0 0
    %343 = vmatpush.bf16.msra.mxu0 0
    %344 = vmatpush.bf16.msra.mxu0 0
    %345 = vmatpush.bf16.msra.mxu0 0
    %346 = vmatpush.bf16.msra.mxu0 %v333
    %347 = vmatpush.bf16.msra.mxu0 %v332
    %348 = vmatmul.bf16.gmra.mxu0 %v338
    %v349 = vpop.f32.mrf.mxu0
    %v350 = vadd.f32 0.0, %v349
    %v351 = vpop.f32.mrf.mxu0
    %352 = vdwg.mxu0
    %v353 = vadd.f32 %v322, %v350
    %v354 = vxor.u32 %v353, 2147483648
    %v355 = vmul.f32 %v354, 1.442695
    %v356 = vpow.pop %v355
    %v357 = vadd.f32 %v356, 1.0
    %v358 = vrcp.pop %v357
    %v359 = vmul.f32 %v357, %v358
    %v360 = vsub.f32 1.0, %v359
    %v361 = vmul.f32 %v358, %v360
    %v362 = vadd.f32 %v358, %v361
    %vm363 = vweird.f32 %v357
    %vm364 = vweird.f32 %v358
    %vm365 = vmor %vm363, %vm364
    %v366 = vsel %vm365, %v358, %v362
    %v367 = vand.u32 2147483647, %v357
    %vm368 = vcmp.eq.f32.partialorder %v367, 8.507059e+37
    %v369 = vand.u32 %v357, 2147483648
    %v370 = vor.u32 1.1754944e-38, %v369
    %v371 = vsel %vm368, %v370, %v366
    %v372 = vmul.f32 1.0, %v371
    %v373 = vtanh.pop %v353
    %375 = vrot.lane.b32.xlu0 %v317, 32
    %v376 = vpop.permute.xlu0 %375
    %v378 = vmul.f32 %v372, %v376
    %380 = vrot.lane.b32.xlu0 %v373, 64
    %v381 = vpop.permute.xlu0 %380
    %v383 = vmul.f32 %v372, %v381
    %385 = vrot.lane.b32.xlu0 %v383, 32
    %v386 = vpop.permute.xlu0 %385
    %v388 = vadd.f32 %v378, %v386
    %v389 = vtanh.pop %v388
    %391 = vrot.lane.b32.xlu0 %v389, 64
    %v392 = vpop.permute.xlu0 %391
    %v394 = vmul.f32 %v372, %v392
    %396 = vrot.lane.b32.xlu0 %v394, 32
    %v397 = vpop.permute.xlu0 %396
    %400 = vrot.lane.b32.xlu0 %v319, 32
    %v401 = vpop.permute.xlu0 %400
    %v403 = vsel %vm336, %v397, %v401
    %v404 = vpack.c.bf16 %v403, %v403
    %v413 = vunpack.c.l.b16 %v304
    %v414 = vunpack.c.l.b16 %v305
    %v415 = vunpack.c.l.b16 %v306
    %v416 = vunpack.c.l.b16 %v307
    %v417 = vunpack.c.l.b16 %v308
    %v418 = vunpack.c.l.b16 %v309
    %v419 = vunpack.c.l.b16 %v310
    %v420 = vunpack.c.l.b16 %v311
    %v421 = vpack.c.b16 %v414, %v413
    %v422 = vpack.c.b16 %v416, %v415
    %v423 = vpack.c.b16 %v418, %v417
    %v424 = vpack.c.b16 %v420, %v419
    %vm429 = vcmask 523264
    %v431 = vsel %vm429, %v404, 0
    %433 = vmatpush.bf16.msra.mxu0 0
    %434 = vmatpush.bf16.msra.mxu0 0
    %435 = vmatpush.bf16.msra.mxu0 0
    %436 = vmatpush.bf16.msra.mxu0 0
    %437 = vmatpush.bf16.msra.mxu0 %v424
    %438 = vmatpush.bf16.msra.mxu0 %v423
    %439 = vmatpush.bf16.msra.mxu0 %v422
    %440 = vmatpush.bf16.msra.mxu0 %v421
    %441 = vmatmul.bf16.gmra.mxu0 %v431
    %v442 = vpop.f32.mrf.mxu0
    %v443 = vadd.f32 %v314, %v442
    %v444 = vpop.f32.mrf.mxu0
    %445 = vdwg.mxu0
    %v446 = vxor.u32 %v443, 2147483648
    %v447 = vmul.f32 %v446, 1.442695
    %v448 = vpow.pop %v447
    %v449 = vadd.f32 %v448, 1.0
    %v450 = vrcp.pop %v449
    %v451 = vmul.f32 %v449, %v450
    %v452 = vsub.f32 1.0, %v451
    %v453 = vmul.f32 %v450, %v452
    %v454 = vadd.f32 %v450, %v453
    %vm455 = vweird.f32 %v449
    %vm456 = vweird.f32 %v450
    %vm457 = vmor %vm455, %vm456
    %v458 = vsel %vm457, %v450, %v454
    %v459 = vand.u32 2147483647, %v449
    %vm460 = vcmp.eq.f32.partialorder %v459, 8.507059e+37
    %v461 = vand.u32 %v449, 2147483648
    %v462 = vor.u32 1.1754944e-38, %v461
    %v463 = vsel %vm460, %v462, %v458
    %v464 = vmul.f32 1.0, %v463
    %v465 = vtanh.pop %v443
    %467 = vrot.lane.b32.xlu0 %v321, 32
    %v468 = vpop.permute.xlu0 %467
    %v470 = vmul.f32 %v464, %v468
    %472 = vrot.lane.b32.xlu0 %v465, 64
    %v473 = vpop.permute.xlu0 %472
    %v475 = vmul.f32 %v464, %v473
    %477 = vrot.lane.b32.xlu0 %v475, 32
    %v478 = vpop.permute.xlu0 %477
    %v480 = vadd.f32 %v470, %v478
    %v481 = vtanh.pop %v480
    %483 = vrot.lane.b32.xlu0 %v481, 64
    %v484 = vpop.permute.xlu0 %483
    %v486 = vmul.f32 %v464, %v484
    %488 = vrot.lane.b32.xlu0 %v486, 32
    %v489 = vpop.permute.xlu0 %488
    %491 = vst.msk [vmem:[#allocation3] sm:$0xff] %vm336, %v489
    %s492 = scalar_lea.vmem [#allocation2], 8
    %v493 = vld [vmem:[%s492] sm:$0xff]
    %v494 = vpack.c.bf16 %v394, %v394
    %496 = vrot.lane.b32.xlu0 %v494, 32
    %v497 = vpop.permute.xlu0 %496
    %v499 = vsel %vm336, %v497, 0
    %501 = vmatpush.bf16.msra.mxu0 0
    %502 = vmatpush.bf16.msra.mxu0 0
    %503 = vmatpush.bf16.msra.mxu0 0
    %504 = vmatpush.bf16.msra.mxu0 0
    %505 = vmatpush.bf16.msra.mxu0 0
    %506 = vmatpush.bf16.msra.mxu0 0
    %507 = vmatpush.bf16.msra.mxu0 %v333
    %508 = vmatpush.bf16.msra.mxu0 %v332
    %509 = vmatmul.bf16.gmra.mxu0 %v499
    %v510 = vpop.f32.mrf.mxu0
    %v511 = vadd.f32 0.0, %v510
    %v512 = vpop.f32.mrf.mxu0
    %513 = vdwg.mxu0
    %v514 = vadd.f32 %v493, %v511
    %v515 = vxor.u32 %v514, 2147483648
    %v516 = vmul.f32 %v515, 1.442695
    %v517 = vpow.pop %v516
    %v518 = vadd.f32 %v517, 1.0
    %v519 = vrcp.pop %v518
    %v520 = vmul.f32 %v518, %v519
    %v521 = vsub.f32 1.0, %v520
    %v522 = vmul.f32 %v519, %v521
    %v523 = vadd.f32 %v519, %v522
    %vm524 = vweird.f32 %v518
    %vm525 = vweird.f32 %v519
    %vm526 = vmor %vm524, %vm525
    %v527 = vsel %vm526, %v519, %v523
    %v528 = vand.u32 2147483647, %v518
    %vm529 = vcmp.eq.f32.partialorder %v528, 8.507059e+37
    %v530 = vand.u32 %v518, 2147483648
    %v531 = vor.u32 1.1754944e-38, %v530
    %v532 = vsel %vm529, %v531, %v527
    %v533 = vmul.f32 1.0, %v532
    %v534 = vtanh.pop %v514
    %v535 = vmul.f32 %v533, %v388
    %537 = vrot.lane.b32.xlu0 %v534, 64
    %v538 = vpop.permute.xlu0 %537
    %v540 = vmul.f32 %v533, %v538
    %542 = vrot.lane.b32.xlu0 %v540, 32
    %v543 = vpop.permute.xlu0 %542
    %v545 = vadd.f32 %v535, %v543
    %v546 = vtanh.pop %v545
    %548 = vrot.lane.b32.xlu0 %v546, 64
    %v549 = vpop.permute.xlu0 %548
    %v551 = vmul.f32 %v533, %v549
    %553 = vrot.lane.b32.xlu0 %v551, 32
    %v554 = vpop.permute.xlu0 %553
    %556 = vrot.lane.b32.xlu0 %v486, 64
    %v557 = vpop.permute.xlu0 %556
    %v559 = vsel %vm336, %v554, %v557
    %v560 = vpack.c.bf16 %v559, %v559
    %v562 = vsel %vm429, %v560, 0
    %564 = vmatpush.bf16.msra.mxu0 0
    %565 = vmatpush.bf16.msra.mxu0 0
    %566 = vmatpush.bf16.msra.mxu0 0
    %567 = vmatpush.bf16.msra.mxu0 0
    %568 = vmatpush.bf16.msra.mxu0 %v424
    %569 = vmatpush.bf16.msra.mxu0 %v423
    %570 = vmatpush.bf16.msra.mxu0 %v422
    %571 = vmatpush.bf16.msra.mxu0 %v421
    %572 = vmatmul.bf16.gmra.mxu0 %v562
    %v573 = vpop.f32.mrf.mxu0
    %v574 = vadd.f32 %v314, %v573
    %v575 = vpop.f32.mrf.mxu0
    %576 = vdwg.mxu0
    %v577 = vxor.u32 %v574, 2147483648
    %v578 = vmul.f32 %v577, 1.442695
    %v579 = vpow.pop %v578
    %v580 = vadd.f32 %v579, 1.0
    %v581 = vrcp.pop %v580
    %v582 = vmul.f32 %v580, %v581
    %v583 = vsub.f32 1.0, %v582
    %v584 = vmul.f32 %v581, %v583
    %v585 = vadd.f32 %v581, %v584
    %vm586 = vweird.f32 %v580
    %vm587 = vweird.f32 %v581
    %vm588 = vmor %vm586, %vm587
    %v589 = vsel %vm588, %v581, %v585
    %v590 = vand.u32 2147483647, %v580
    %vm591 = vcmp.eq.f32.partialorder %v590, 8.507059e+37
    %v592 = vand.u32 %v580, 2147483648
    %v593 = vor.u32 1.1754944e-38, %v592
    %v594 = vsel %vm591, %v593, %v589
    %v595 = vmul.f32 1.0, %v594
    %v596 = vtanh.pop %v574
    %v597 = vmul.f32 %v595, %v480
    %599 = vrot.lane.b32.xlu0 %v596, 64
    %v600 = vpop.permute.xlu0 %599
    %v602 = vmul.f32 %v595, %v600
    %604 = vrot.lane.b32.xlu0 %v602, 32
    %v605 = vpop.permute.xlu0 %604
    %v607 = vadd.f32 %v597, %v605
    %v608 = vtanh.pop %v607
    %610 = vrot.lane.b32.xlu0 %v608, 64
    %v611 = vpop.permute.xlu0 %610
    %v613 = vmul.f32 %v595, %v611
    %615 = vrot.lane.b32.xlu0 %v613, 32
    %v616 = vpop.permute.xlu0 %615
    %s618 = scalar_lea.vmem [#allocation3], 8
    %619 = vst.msk [vmem:[%s618] sm:$0xff] %vm336, %v616
    %s620 = scalar_lea.vmem [#allocation2], 16
    %v621 = vld [vmem:[%s620] sm:$0xff]
    %v622 = vpack.c.bf16 %v551, %v551
    %624 = vrot.lane.b32.xlu0 %v622, 32
    %v625 = vpop.permute.xlu0 %624
    %v627 = vsel %vm336, %v625, 0
    %629 = vmatpush.bf16.msra.mxu0 0
    %630 = vmatpush.bf16.msra.mxu0 0
    %631 = vmatpush.bf16.msra.mxu0 0
    %632 = vmatpush.bf16.msra.mxu0 0
    %633 = vmatpush.bf16.msra.mxu0 0
    %634 = vmatpush.bf16.msra.mxu0 0
    %635 = vmatpush.bf16.msra.mxu0 %v333
    %636 = vmatpush.bf16.msra.mxu0 %v332
    %637 = vmatmul.bf16.gmra.mxu0 %v627
    %v638 = vpop.f32.mrf.mxu0
    %v639 = vadd.f32 0.0, %v638
    %v640 = vpop.f32.mrf.mxu0
    %641 = vdwg.mxu0
    %v642 = vadd.f32 %v621, %v639
    %v643 = vxor.u32 %v642, 2147483648
    %v644 = vmul.f32 %v643, 1.442695
    %v645 = vpow.pop %v644
    %v646 = vadd.f32 %v645, 1.0
    %v647 = vrcp.pop %v646
    %v648 = vmul.f32 %v646, %v647
    %v649 = vsub.f32 1.0, %v648
    %v650 = vmul.f32 %v647, %v649
    %v651 = vadd.f32 %v647, %v650
    %vm652 = vweird.f32 %v646
    %vm653 = vweird.f32 %v647
    %vm654 = vmor %vm652, %vm653
    %v655 = vsel %vm654, %v647, %v651
    %v656 = vand.u32 2147483647, %v646
    %vm657 = vcmp.eq.f32.partialorder %v656, 8.507059e+37
    %v658 = vand.u32 %v646, 2147483648
    %v659 = vor.u32 1.1754944e-38, %v658
    %v660 = vsel %vm657, %v659, %v655
    %v661 = vmul.f32 1.0, %v660
    %v662 = vtanh.pop %v642
    %v663 = vmul.f32 %v661, %v545
    %665 = vrot.lane.b32.xlu0 %v662, 64
    %v666 = vpop.permute.xlu0 %665
    %v668 = vmul.f32 %v661, %v666
    %670 = vrot.lane.b32.xlu0 %v668, 32
    %v671 = vpop.permute.xlu0 %670
    %v673 = vadd.f32 %v663, %v671
    %v674 = vtanh.pop %v673
    %676 = vrot.lane.b32.xlu0 %v674, 64
    %v677 = vpop.permute.xlu0 %676
    %v679 = vmul.f32 %v661, %v677
    %681 = vrot.lane.b32.xlu0 %v679, 32
    %v682 = vpop.permute.xlu0 %681
    %684 = vrot.lane.b32.xlu0 %v613, 64
    %v685 = vpop.permute.xlu0 %684
    %v687 = vsel %vm336, %v682, %v685
    %v688 = vpack.c.bf16 %v687, %v687
    %v690 = vsel %vm429, %v688, 0
    %692 = vmatpush.bf16.msra.mxu0 0
    %693 = vmatpush.bf16.msra.mxu0 0
    %694 = vmatpush.bf16.msra.mxu0 0
    %695 = vmatpush.bf16.msra.mxu0 0
    %696 = vmatpush.bf16.msra.mxu0 %v424
    %697 = vmatpush.bf16.msra.mxu0 %v423
    %698 = vmatpush.bf16.msra.mxu0 %v422
    %699 = vmatpush.bf16.msra.mxu0 %v421
    %700 = vmatmul.bf16.gmra.mxu0 %v690
    %v701 = vpop.f32.mrf.mxu0
    %v702 = vadd.f32 %v314, %v701
    %v703 = vpop.f32.mrf.mxu0
    %704 = vdwg.mxu0
    %v705 = vxor.u32 %v702, 2147483648
    %v706 = vmul.f32 %v705, 1.442695
    %v707 = vpow.pop %v706
    %v708 = vadd.f32 %v707, 1.0
    %v709 = vrcp.pop %v708
    %v710 = vmul.f32 %v708, %v709
    %v711 = vsub.f32 1.0, %v710
    %v712 = vmul.f32 %v709, %v711
    %v713 = vadd.f32 %v709, %v712
    %vm714 = vweird.f32 %v708
    %vm715 = vweird.f32 %v709
    %vm716 = vmor %vm714, %vm715
    %v717 = vsel %vm716, %v709, %v713
    %v718 = vand.u32 2147483647, %v708
    %vm719 = vcmp.eq.f32.partialorder %v718, 8.507059e+37
    %v720 = vand.u32 %v708, 2147483648
    %v721 = vor.u32 1.1754944e-38, %v720
    %v722 = vsel %vm719, %v721, %v717
    %v723 = vmul.f32 1.0, %v722
    %v724 = vtanh.pop %v702
    %v725 = vmul.f32 %v723, %v607
    %727 = vrot.lane.b32.xlu0 %v724, 64
    %v728 = vpop.permute.xlu0 %727
    %v730 = vmul.f32 %v723, %v728
    %732 = vrot.lane.b32.xlu0 %v730, 32
    %v733 = vpop.permute.xlu0 %732
    %v735 = vadd.f32 %v725, %v733
    %v736 = vtanh.pop %v735
    %738 = vrot.lane.b32.xlu0 %v736, 64
    %v739 = vpop.permute.xlu0 %738
    %v741 = vmul.f32 %v723, %v739
    %743 = vrot.lane.b32.xlu0 %v741, 32
    %v744 = vpop.permute.xlu0 %743
    %s746 = scalar_lea.vmem [#allocation3], 16
    %747 = vst.msk [vmem:[%s746] sm:$0xff] %vm336, %v744
    %s748 = scalar_lea.vmem [#allocation2], 24
    %v749 = vld [vmem:[%s748] sm:$0xff]
    %v750 = vpack.c.bf16 %v679, %v679
    %752 = vrot.lane.b32.xlu0 %v750, 32
    %v753 = vpop.permute.xlu0 %752
    %v755 = vsel %vm336, %v753, 0
    %757 = vmatpush.bf16.msra.mxu0 0
    %758 = vmatpush.bf16.msra.mxu0 0
    %759 = vmatpush.bf16.msra.mxu0 0
    %760 = vmatpush.bf16.msra.mxu0 0
    %761 = vmatpush.bf16.msra.mxu0 0
    %762 = vmatpush.bf16.msra.mxu0 0
    %763 = vmatpush.bf16.msra.mxu0 %v333
    %764 = vmatpush.bf16.msra.mxu0 %v332
    %765 = vmatmul.bf16.gmra.mxu0 %v755
    %v766 = vpop.f32.mrf.mxu0
    %v767 = vadd.f32 0.0, %v766
    %v768 = vpop.f32.mrf.mxu0
    %769 = vdwg.mxu0
    %v770 = vadd.f32 %v749, %v767
    %v771 = vxor.u32 %v770, 2147483648
    %v772 = vmul.f32 %v771, 1.442695
    %v773 = vpow.pop %v772
    %v774 = vadd.f32 %v773, 1.0
    %v775 = vrcp.pop %v774
    %v776 = vmul.f32 %v774, %v775
    %v777 = vsub.f32 1.0, %v776
    %v778 = vmul.f32 %v775, %v777
    %v779 = vadd.f32 %v775, %v778
    %vm780 = vweird.f32 %v774
    %vm781 = vweird.f32 %v775
    %vm782 = vmor %vm780, %vm781
    %v783 = vsel %vm782, %v775, %v779
    %v784 = vand.u32 2147483647, %v774
    %vm785 = vcmp.eq.f32.partialorder %v784, 8.507059e+37
    %v786 = vand.u32 %v774, 2147483648
    %v787 = vor.u32 1.1754944e-38, %v786
    %v788 = vsel %vm785, %v787, %v783
    %v789 = vmul.f32 1.0, %v788
    %v790 = vtanh.pop %v770
    %v791 = vmul.f32 %v789, %v673
    %793 = vrot.lane.b32.xlu0 %v790, 64
    %v794 = vpop.permute.xlu0 %793
    %v796 = vmul.f32 %v789, %v794
    %798 = vrot.lane.b32.xlu0 %v796, 32
    %v799 = vpop.permute.xlu0 %798
    %v801 = vadd.f32 %v791, %v799
    %v802 = vtanh.pop %v801
    %804 = vrot.lane.b32.xlu0 %v802, 64
    %v805 = vpop.permute.xlu0 %804
    %v807 = vmul.f32 %v789, %v805
    %809 = vrot.lane.b32.xlu0 %v807, 32
    %v810 = vpop.permute.xlu0 %809
    %812 = vrot.lane.b32.xlu0 %v741, 64
    %v813 = vpop.permute.xlu0 %812
    %v815 = vsel %vm336, %v810, %v813
    %v816 = vpack.c.bf16 %v815, %v815
    %v818 = vsel %vm429, %v816, 0
    %820 = vmatpush.bf16.msra.mxu0 0
    %821 = vmatpush.bf16.msra.mxu0 0
    %822 = vmatpush.bf16.msra.mxu0 0
    %823 = vmatpush.bf16.msra.mxu0 0
    %824 = vmatpush.bf16.msra.mxu0 %v424
    %825 = vmatpush.bf16.msra.mxu0 %v423
    %826 = vmatpush.bf16.msra.mxu0 %v422
    %827 = vmatpush.bf16.msra.mxu0 %v421
    %828 = vmatmul.bf16.gmra.mxu0 %v818
    %v829 = vpop.f32.mrf.mxu0
    %v830 = vadd.f32 %v314, %v829
    %v831 = vpop.f32.mrf.mxu0
    %832 = vdwg.mxu0
    %v833 = vxor.u32 %v830, 2147483648
    %v834 = vmul.f32 %v833, 1.442695
    %v835 = vpow.pop %v834
    %v836 = vadd.f32 %v835, 1.0
    %v837 = vrcp.pop %v836
    %v838 = vmul.f32 %v836, %v837
    %v839 = vsub.f32 1.0, %v838
    %v840 = vmul.f32 %v837, %v839
    %v841 = vadd.f32 %v837, %v840
    %vm842 = vweird.f32 %v836
    %vm843 = vweird.f32 %v837
    %vm844 = vmor %vm842, %vm843
    %v845 = vsel %vm844, %v837, %v841
    %v846 = vand.u32 2147483647, %v836
    %vm847 = vcmp.eq.f32.partialorder %v846, 8.507059e+37
    %v848 = vand.u32 %v836, 2147483648
    %v849 = vor.u32 1.1754944e-38, %v848
    %v850 = vsel %vm847, %v849, %v845
    %v851 = vmul.f32 1.0, %v850
    %v852 = vtanh.pop %v830
    %v853 = vmul.f32 %v851, %v735
    %855 = vrot.lane.b32.xlu0 %v852, 64
    %v856 = vpop.permute.xlu0 %855
    %v858 = vmul.f32 %v851, %v856
    %860 = vrot.lane.b32.xlu0 %v858, 32
    %v861 = vpop.permute.xlu0 %860
    %v863 = vadd.f32 %v853, %v861
    %v864 = vtanh.pop %v863
    %866 = vrot.lane.b32.xlu0 %v864, 64
    %v867 = vpop.permute.xlu0 %866
    %v869 = vmul.f32 %v851, %v867
    %871 = vrot.lane.b32.xlu0 %v869, 32
    %v872 = vpop.permute.xlu0 %871
    %s874 = scalar_lea.vmem [#allocation3], 24
    %875 = vst.msk [vmem:[%s874] sm:$0xff] %vm336, %v872
    %s876 = scalar_lea.vmem [#allocation2], 32
    %v877 = vld [vmem:[%s876] sm:$0xff]
    %v878 = vpack.c.bf16 %v807, %v807
    %880 = vrot.lane.b32.xlu0 %v878, 32
    %v881 = vpop.permute.xlu0 %880
    %v883 = vsel %vm336, %v881, 0
    %885 = vmatpush.bf16.msra.mxu0 0
    %886 = vmatpush.bf16.msra.mxu0 0
    %887 = vmatpush.bf16.msra.mxu0 0
    %888 = vmatpush.bf16.msra.mxu0 0
    %889 = vmatpush.bf16.msra.mxu0 0
    %890 = vmatpush.bf16.msra.mxu0 0
    %891 = vmatpush.bf16.msra.mxu0 %v333
    %892 = vmatpush.bf16.msra.mxu0 %v332
    %893 = vmatmul.bf16.gmra.mxu0 %v883
    %v894 = vpop.f32.mrf.mxu0
    %v895 = vadd.f32 0.0, %v894
    %v896 = vpop.f32.mrf.mxu0
    %897 = vdwg.mxu0
    %v898 = vadd.f32 %v877, %v895
    %v899 = vxor.u32 %v898, 2147483648
    %v900 = vmul.f32 %v899, 1.442695
    %v901 = vpow.pop %v900
    %v902 = vadd.f32 %v901, 1.0
    %v903 = vrcp.pop %v902
    %v904 = vmul.f32 %v902, %v903
    %v905 = vsub.f32 1.0, %v904
    %v906 = vmul.f32 %v903, %v905
    %v907 = vadd.f32 %v903, %v906
    %vm908 = vweird.f32 %v902
    %vm909 = vweird.f32 %v903
    %vm910 = vmor %vm908, %vm909
    %v911 = vsel %vm910, %v903, %v907
    %v912 = vand.u32 2147483647, %v902
    %vm913 = vcmp.eq.f32.partialorder %v912, 8.507059e+37
    %v914 = vand.u32 %v902, 2147483648
    %v915 = vor.u32 1.1754944e-38, %v914
    %v916 = vsel %vm913, %v915, %v911
    %v917 = vmul.f32 1.0, %v916
    %v918 = vtanh.pop %v898
    %v919 = vmul.f32 %v917, %v801
    %921 = vrot.lane.b32.xlu0 %v918, 64
    %v922 = vpop.permute.xlu0 %921
    %v924 = vmul.f32 %v917, %v922
    %926 = vrot.lane.b32.xlu0 %v924, 32
    %v927 = vpop.permute.xlu0 %926
    %v929 = vadd.f32 %v919, %v927
    %v930 = vtanh.pop %v929
    %932 = vrot.lane.b32.xlu0 %v930, 64
    %v933 = vpop.permute.xlu0 %932
    %v935 = vmul.f32 %v917, %v933
    %937 = vrot.lane.b32.xlu0 %v935, 32
    %v938 = vpop.permute.xlu0 %937
    %940 = vrot.lane.b32.xlu0 %v869, 64
    %v941 = vpop.permute.xlu0 %940
    %v943 = vsel %vm336, %v938, %v941
    %v944 = vpack.c.bf16 %v943, %v943
    %v946 = vsel %vm429, %v944, 0
    %948 = vmatpush.bf16.msra.mxu0 0
    %949 = vmatpush.bf16.msra.mxu0 0
    %950 = vmatpush.bf16.msra.mxu0 0
    %951 = vmatpush.bf16.msra.mxu0 0
    %952 = vmatpush.bf16.msra.mxu0 %v424
    %953 = vmatpush.bf16.msra.mxu0 %v423
    %954 = vmatpush.bf16.msra.mxu0 %v422
    %955 = vmatpush.bf16.msra.mxu0 %v421
    %956 = vmatmul.bf16.gmra.mxu0 %v946
    %v957 = vpop.f32.mrf.mxu0
    %v958 = vadd.f32 %v314, %v957
    %v959 = vpop.f32.mrf.mxu0
    %960 = vdwg.mxu0
    %v961 = vxor.u32 %v958, 2147483648
    %v962 = vmul.f32 %v961, 1.442695
    %v963 = vpow.pop %v962
    %v964 = vadd.f32 %v963, 1.0
    %v965 = vrcp.pop %v964
    %v966 = vmul.f32 %v964, %v965
    %v967 = vsub.f32 1.0, %v966
    %v968 = vmul.f32 %v965, %v967
    %v969 = vadd.f32 %v965, %v968
    %vm970 = vweird.f32 %v964
    %vm971 = vweird.f32 %v965
    %vm972 = vmor %vm970, %vm971
    %v973 = vsel %vm972, %v965, %v969
    %v974 = vand.u32 2147483647, %v964
    %vm975 = vcmp.eq.f32.partialorder %v974, 8.507059e+37
    %v976 = vand.u32 %v964, 2147483648
    %v977 = vor.u32 1.1754944e-38, %v976
    %v978 = vsel %vm975, %v977, %v973
    %v979 = vmul.f32 1.0, %v978
    %v980 = vtanh.pop %v958
    %v981 = vmul.f32 %v979, %v863
    %983 = vrot.lane.b32.xlu0 %v980, 64
    %v984 = vpop.permute.xlu0 %983
    %v986 = vmul.f32 %v979, %v984
    %988 = vrot.lane.b32.xlu0 %v986, 32
    %v989 = vpop.permute.xlu0 %988
    %v991 = vadd.f32 %v981, %v989
    %v992 = vtanh.pop %v991
    %994 = vrot.lane.b32.xlu0 %v992, 64
    %v995 = vpop.permute.xlu0 %994
    %v997 = vmul.f32 %v979, %v995
    %999 = vrot.lane.b32.xlu0 %v997, 32
    %v1000 = vpop.permute.xlu0 %999
    %s1002 = scalar_lea.vmem [#allocation3], 32
    %1003 = vst.msk [vmem:[%s1002] sm:$0xff] %vm336, %v1000
    %s1004 = scalar_lea.vmem [#allocation2], 40
    %v1005 = vld [vmem:[%s1004] sm:$0xff]
    %v1006 = vpack.c.bf16 %v935, %v935
    %1008 = vrot.lane.b32.xlu0 %v1006, 32
    %v1009 = vpop.permute.xlu0 %1008
    %v1011 = vsel %vm336, %v1009, 0
    %1013 = vmatpush.bf16.msra.mxu0 0
    %1014 = vmatpush.bf16.msra.mxu0 0
    %1015 = vmatpush.bf16.msra.mxu0 0
    %1016 = vmatpush.bf16.msra.mxu0 0
    %1017 = vmatpush.bf16.msra.mxu0 0
    %1018 = vmatpush.bf16.msra.mxu0 0
    %1019 = vmatpush.bf16.msra.mxu0 %v333
    %1020 = vmatpush.bf16.msra.mxu0 %v332
    %1021 = vmatmul.bf16.gmra.mxu0 %v1011
    %v1022 = vpop.f32.mrf.mxu0
    %v1023 = vadd.f32 0.0, %v1022
    %v1024 = vpop.f32.mrf.mxu0
    %1025 = vdwg.mxu0
    %v1026 = vadd.f32 %v1005, %v1023
    %v1027 = vxor.u32 %v1026, 2147483648
    %v1028 = vmul.f32 %v1027, 1.442695
    %v1029 = vpow.pop %v1028
    %v1030 = vadd.f32 %v1029, 1.0
    %v1031 = vrcp.pop %v1030
    %v1032 = vmul.f32 %v1030, %v1031
    %v1033 = vsub.f32 1.0, %v1032
    %v1034 = vmul.f32 %v1031, %v1033
    %v1035 = vadd.f32 %v1031, %v1034
    %vm1036 = vweird.f32 %v1030
    %vm1037 = vweird.f32 %v1031
    %vm1038 = vmor %vm1036, %vm1037
    %v1039 = vsel %vm1038, %v1031, %v1035
    %v1040 = vand.u32 2147483647, %v1030
    %vm1041 = vcmp.eq.f32.partialorder %v1040, 8.507059e+37
    %v1042 = vand.u32 %v1030, 2147483648
    %v1043 = vor.u32 1.1754944e-38, %v1042
    %v1044 = vsel %vm1041, %v1043, %v1039
    %v1045 = vmul.f32 1.0, %v1044
    %v1046 = vtanh.pop %v1026
    %v1047 = vmul.f32 %v1045, %v929
    %1049 = vrot.lane.b32.xlu0 %v1046, 64
    %v1050 = vpop.permute.xlu0 %1049
    %v1052 = vmul.f32 %v1045, %v1050
    %1054 = vrot.lane.b32.xlu0 %v1052, 32
    %v1055 = vpop.permute.xlu0 %1054
    %v1057 = vadd.f32 %v1047, %v1055
    %v1058 = vtanh.pop %v1057
    %1060 = vrot.lane.b32.xlu0 %v1058, 64
    %v1061 = vpop.permute.xlu0 %1060
    %v1063 = vmul.f32 %v1045, %v1061
    %1065 = vrot.lane.b32.xlu0 %v1063, 32
    %v1066 = vpop.permute.xlu0 %1065
    %1068 = vrot.lane.b32.xlu0 %v997, 64
    %v1069 = vpop.permute.xlu0 %1068
    %v1071 = vsel %vm336, %v1066, %v1069
    %v1072 = vpack.c.bf16 %v1071, %v1071
    %v1074 = vsel %vm429, %v1072, 0
    %1076 = vmatpush.bf16.msra.mxu0 0
    %1077 = vmatpush.bf16.msra.mxu0 0
    %1078 = vmatpush.bf16.msra.mxu0 0
    %1079 = vmatpush.bf16.msra.mxu0 0
    %1080 = vmatpush.bf16.msra.mxu0 %v424
    %1081 = vmatpush.bf16.msra.mxu0 %v423
    %1082 = vmatpush.bf16.msra.mxu0 %v422
    %1083 = vmatpush.bf16.msra.mxu0 %v421
    %1084 = vmatmul.bf16.gmra.mxu0 %v1074
    %v1085 = vpop.f32.mrf.mxu0
    %v1086 = vadd.f32 %v314, %v1085
    %v1087 = vpop.f32.mrf.mxu0
    %1088 = vdwg.mxu0
    %v1089 = vxor.u32 %v1086, 2147483648
    %v1090 = vmul.f32 %v1089, 1.442695
    %v1091 = vpow.pop %v1090
    %v1092 = vadd.f32 %v1091, 1.0
    %v1093 = vrcp.pop %v1092
    %v1094 = vmul.f32 %v1092, %v1093
    %v1095 = vsub.f32 1.0, %v1094
    %v1096 = vmul.f32 %v1093, %v1095
    %v1097 = vadd.f32 %v1093, %v1096
    %vm1098 = vweird.f32 %v1092
    %vm1099 = vweird.f32 %v1093
    %vm1100 = vmor %vm1098, %vm1099
    %v1101 = vsel %vm1100, %v1093, %v1097
    %v1102 = vand.u32 2147483647, %v1092
    %vm1103 = vcmp.eq.f32.partialorder %v1102, 8.507059e+37
    %v1104 = vand.u32 %v1092, 2147483648
    %v1105 = vor.u32 1.1754944e-38, %v1104
    %v1106 = vsel %vm1103, %v1105, %v1101
    %v1107 = vmul.f32 1.0, %v1106
    %v1108 = vtanh.pop %v1086
    %v1109 = vmul.f32 %v1107, %v991
    %1111 = vrot.lane.b32.xlu0 %v1108, 64
    %v1112 = vpop.permute.xlu0 %1111
    %v1114 = vmul.f32 %v1107, %v1112
    %1116 = vrot.lane.b32.xlu0 %v1114, 32
    %v1117 = vpop.permute.xlu0 %1116
    %v1119 = vadd.f32 %v1109, %v1117
    %v1120 = vtanh.pop %v1119
    %1122 = vrot.lane.b32.xlu0 %v1120, 64
    %v1123 = vpop.permute.xlu0 %1122
    %v1125 = vmul.f32 %v1107, %v1123
    %1127 = vrot.lane.b32.xlu0 %v1125, 32
    %v1128 = vpop.permute.xlu0 %1127
    %s1130 = scalar_lea.vmem [#allocation3], 40
    %1131 = vst.msk [vmem:[%s1130] sm:$0xff] %vm336, %v1128
    %s1132 = scalar_lea.vmem [#allocation2], 48
    %v1133 = vld [vmem:[%s1132] sm:$0xff]
    %v1134 = vpack.c.bf16 %v1063, %v1063
    %1136 = vrot.lane.b32.xlu0 %v1134, 32
    %v1137 = vpop.permute.xlu0 %1136
    %v1139 = vsel %vm336, %v1137, 0
    %1141 = vmatpush.bf16.msra.mxu0 0
    %1142 = vmatpush.bf16.msra.mxu0 0
    %1143 = vmatpush.bf16.msra.mxu0 0
    %1144 = vmatpush.bf16.msra.mxu0 0
    %1145 = vmatpush.bf16.msra.mxu0 0
    %1146 = vmatpush.bf16.msra.mxu0 0
    %1147 = vmatpush.bf16.msra.mxu0 %v333
    %1148 = vmatpush.bf16.msra.mxu0 %v332
    %1149 = vmatmul.bf16.gmra.mxu0 %v1139
    %v1150 = vpop.f32.mrf.mxu0
    %v1151 = vadd.f32 0.0, %v1150
    %v1152 = vpop.f32.mrf.mxu0
    %1153 = vdwg.mxu0
    %v1154 = vadd.f32 %v1133, %v1151
    %v1155 = vxor.u32 %v1154, 2147483648
    %v1156 = vmul.f32 %v1155, 1.442695
    %v1157 = vpow.pop %v1156
    %v1158 = vadd.f32 %v1157, 1.0
    %v1159 = vrcp.pop %v1158
    %v1160 = vmul.f32 %v1158, %v1159
    %v1161 = vsub.f32 1.0, %v1160
    %v1162 = vmul.f32 %v1159, %v1161
    %v1163 = vadd.f32 %v1159, %v1162
    %vm1164 = vweird.f32 %v1158
    %vm1165 = vweird.f32 %v1159
    %vm1166 = vmor %vm1164, %vm1165
    %v1167 = vsel %vm1166, %v1159, %v1163
    %v1168 = vand.u32 2147483647, %v1158
    %vm1169 = vcmp.eq.f32.partialorder %v1168, 8.507059e+37
    %v1170 = vand.u32 %v1158, 2147483648
    %v1171 = vor.u32 1.1754944e-38, %v1170
    %v1172 = vsel %vm1169, %v1171, %v1167
    %v1173 = vmul.f32 1.0, %v1172
    %v1174 = vtanh.pop %v1154
    %v1175 = vmul.f32 %v1173, %v1057
    %1177 = vrot.lane.b32.xlu0 %v1174, 64
    %v1178 = vpop.permute.xlu0 %1177
    %v1180 = vmul.f32 %v1173, %v1178
    %1182 = vrot.lane.b32.xlu0 %v1180, 32
    %v1183 = vpop.permute.xlu0 %1182
    %v1185 = vadd.f32 %v1175, %v1183
    %v1186 = vtanh.pop %v1185
    %1188 = vrot.lane.b32.xlu0 %v1186, 64
    %v1189 = vpop.permute.xlu0 %1188
    %v1191 = vmul.f32 %v1173, %v1189
    %1193 = vrot.lane.b32.xlu0 %v1191, 32
    %v1194 = vpop.permute.xlu0 %1193
    %1196 = vrot.lane.b32.xlu0 %v1125, 64
    %v1197 = vpop.permute.xlu0 %1196
    %v1199 = vsel %vm336, %v1194, %v1197
    %v1200 = vpack.c.bf16 %v1199, %v1199
    %v1202 = vsel %vm429, %v1200, 0
    %1204 = vmatpush.bf16.msra.mxu0 0
    %1205 = vmatpush.bf16.msra.mxu0 0
    %1206 = vmatpush.bf16.msra.mxu0 0
    %1207 = vmatpush.bf16.msra.mxu0 0
    %1208 = vmatpush.bf16.msra.mxu0 %v424
    %1209 = vmatpush.bf16.msra.mxu0 %v423
    %1210 = vmatpush.bf16.msra.mxu0 %v422
    %1211 = vmatpush.bf16.msra.mxu0 %v421
    %1212 = vmatmul.bf16.gmra.mxu0 %v1202
    %v1213 = vpop.f32.mrf.mxu0
    %v1214 = vadd.f32 %v314, %v1213
    %v1215 = vpop.f32.mrf.mxu0
    %1216 = vdwg.mxu0
    %v1217 = vxor.u32 %v1214, 2147483648
    %v1218 = vmul.f32 %v1217, 1.442695
    %v1219 = vpow.pop %v1218
    %v1220 = vadd.f32 %v1219, 1.0
    %v1221 = vrcp.pop %v1220
    %v1222 = vmul.f32 %v1220, %v1221
    %v1223 = vsub.f32 1.0, %v1222
    %v1224 = vmul.f32 %v1221, %v1223
    %v1225 = vadd.f32 %v1221, %v1224
    %vm1226 = vweird.f32 %v1220
    %vm1227 = vweird.f32 %v1221
    %vm1228 = vmor %vm1226, %vm1227
    %v1229 = vsel %vm1228, %v1221, %v1225
    %v1230 = vand.u32 2147483647, %v1220
    %vm1231 = vcmp.eq.f32.partialorder %v1230, 8.507059e+37
    %v1232 = vand.u32 %v1220, 2147483648
    %v1233 = vor.u32 1.1754944e-38, %v1232
    %v1234 = vsel %vm1231, %v1233, %v1229
    %v1235 = vmul.f32 1.0, %v1234
    %v1236 = vtanh.pop %v1214
    %v1237 = vmul.f32 %v1235, %v1119
    %1239 = vrot.lane.b32.xlu0 %v1236, 64
    %v1240 = vpop.permute.xlu0 %1239
    %v1242 = vmul.f32 %v1235, %v1240
    %1244 = vrot.lane.b32.xlu0 %v1242, 32
    %v1245 = vpop.permute.xlu0 %1244
    %v1247 = vadd.f32 %v1237, %v1245
    %v1248 = vtanh.pop %v1247
    %1250 = vrot.lane.b32.xlu0 %v1248, 64
    %v1251 = vpop.permute.xlu0 %1250
    %v1253 = vmul.f32 %v1235, %v1251
    %1255 = vrot.lane.b32.xlu0 %v1253, 32
    %v1256 = vpop.permute.xlu0 %1255
    %s1258 = scalar_lea.vmem [#allocation3], 48
    %1259 = vst.msk [vmem:[%s1258] sm:$0xff] %vm336, %v1256
    %s1260 = scalar_lea.vmem [#allocation2], 56
    %v1261 = vld [vmem:[%s1260] sm:$0xff]
    %v1262 = vpack.c.bf16 %v1191, %v1191
    %1264 = vrot.lane.b32.xlu0 %v1262, 32
    %v1265 = vpop.permute.xlu0 %1264
    %v1267 = vsel %vm336, %v1265, 0
    %1269 = vmatpush.bf16.msra.mxu0 0
    %1270 = vmatpush.bf16.msra.mxu0 0
    %1271 = vmatpush.bf16.msra.mxu0 0
    %1272 = vmatpush.bf16.msra.mxu0 0
    %1273 = vmatpush.bf16.msra.mxu0 0
    %1274 = vmatpush.bf16.msra.mxu0 0
    %1275 = vmatpush.bf16.msra.mxu0 %v333
    %1276 = vmatpush.bf16.msra.mxu0 %v332
    %1277 = vmatmul.bf16.gmra.mxu0 %v1267
    %v1278 = vpop.f32.mrf.mxu0
    %v1279 = vadd.f32 0.0, %v1278
    %v1280 = vpop.f32.mrf.mxu0
    %1281 = vdwg.mxu0
    %v1282 = vadd.f32 %v1261, %v1279
    %v1283 = vxor.u32 %v1282, 2147483648
    %v1284 = vmul.f32 %v1283, 1.442695
    %v1285 = vpow.pop %v1284
    %v1286 = vadd.f32 %v1285, 1.0
    %v1287 = vrcp.pop %v1286
    %v1288 = vmul.f32 %v1286, %v1287
    %v1289 = vsub.f32 1.0, %v1288
    %v1290 = vmul.f32 %v1287, %v1289
    %v1291 = vadd.f32 %v1287, %v1290
    %vm1292 = vweird.f32 %v1286
    %vm1293 = vweird.f32 %v1287
    %vm1294 = vmor %vm1292, %vm1293
    %v1295 = vsel %vm1294, %v1287, %v1291
    %v1296 = vand.u32 2147483647, %v1286
    %vm1297 = vcmp.eq.f32.partialorder %v1296, 8.507059e+37
    %v1298 = vand.u32 %v1286, 2147483648
    %v1299 = vor.u32 1.1754944e-38, %v1298
    %v1300 = vsel %vm1297, %v1299, %v1295
    %v1301 = vmul.f32 1.0, %v1300
    %v1302 = vtanh.pop %v1282
    %v1303 = vmul.f32 %v1301, %v1185
    %1305 = vrot.lane.b32.xlu0 %v1302, 64
    %v1306 = vpop.permute.xlu0 %1305
    %v1308 = vmul.f32 %v1301, %v1306
    %1310 = vrot.lane.b32.xlu0 %v1308, 32
    %v1311 = vpop.permute.xlu0 %1310
    %v1313 = vadd.f32 %v1303, %v1311
    %v1314 = vtanh.pop %v1313
    %1316 = vrot.lane.b32.xlu0 %v1314, 64
    %v1317 = vpop.permute.xlu0 %1316
    %v1319 = vmul.f32 %v1301, %v1317
    %1321 = vrot.lane.b32.xlu0 %v1319, 32
    %v1322 = vpop.permute.xlu0 %1321
    %1324 = vrot.lane.b32.xlu0 %v1253, 64
    %v1325 = vpop.permute.xlu0 %1324
    %v1327 = vsel %vm336, %v1322, %v1325
    %v1328 = vpack.c.bf16 %v1327, %v1327
    %v1330 = vsel %vm429, %v1328, 0
    %1332 = vmatpush.bf16.msra.mxu0 0
    %1333 = vmatpush.bf16.msra.mxu0 0
    %1334 = vmatpush.bf16.msra.mxu0 0
    %1335 = vmatpush.bf16.msra.mxu0 0
    %1336 = vmatpush.bf16.msra.mxu0 %v424
    %1337 = vmatpush.bf16.msra.mxu0 %v423
    %1338 = vmatpush.bf16.msra.mxu0 %v422
    %1339 = vmatpush.bf16.msra.mxu0 %v421
    %1340 = vmatmul.bf16.gmra.mxu0 %v1330
    %v1341 = vpop.f32.mrf.mxu0
    %v1342 = vadd.f32 %v314, %v1341
    %v1343 = vpop.f32.mrf.mxu0
    %1344 = vdwg.mxu0
    %v1345 = vxor.u32 %v1342, 2147483648
    %v1346 = vmul.f32 %v1345, 1.442695
    %v1347 = vpow.pop %v1346
    %v1348 = vadd.f32 %v1347, 1.0
    %v1349 = vrcp.pop %v1348
    %v1350 = vmul.f32 %v1348, %v1349
    %v1351 = vsub.f32 1.0, %v1350
    %v1352 = vmul.f32 %v1349, %v1351
    %v1353 = vadd.f32 %v1349, %v1352
    %vm1354 = vweird.f32 %v1348
    %vm1355 = vweird.f32 %v1349
    %vm1356 = vmor %vm1354, %vm1355
    %v1357 = vsel %vm1356, %v1349, %v1353
    %v1358 = vand.u32 2147483647, %v1348
    %vm1359 = vcmp.eq.f32.partialorder %v1358, 8.507059e+37
    %v1360 = vand.u32 %v1348, 2147483648
    %v1361 = vor.u32 1.1754944e-38, %v1360
    %v1362 = vsel %vm1359, %v1361, %v1357
    %v1363 = vmul.f32 1.0, %v1362
    %v1364 = vtanh.pop %v1342
    %v1365 = vmul.f32 %v1363, %v1247
    %1367 = vrot.lane.b32.xlu0 %v1364, 64
    %v1368 = vpop.permute.xlu0 %1367
    %v1370 = vmul.f32 %v1363, %v1368
    %1372 = vrot.lane.b32.xlu0 %v1370, 32
    %v1373 = vpop.permute.xlu0 %1372
    %v1375 = vadd.f32 %v1365, %v1373
    %v1376 = vtanh.pop %v1375
    %1378 = vrot.lane.b32.xlu0 %v1376, 64
    %v1379 = vpop.permute.xlu0 %1378
    %v1381 = vmul.f32 %v1363, %v1379
    %1383 = vrot.lane.b32.xlu0 %v1381, 32
    %v1384 = vpop.permute.xlu0 %1383
    %s1386 = scalar_lea.vmem [#allocation3], 56
    %1387 = vst.msk [vmem:[%s1386] sm:$0xff] %vm336, %v1384
    %1388 = vst.msk [vmem:[#allocation4] sm:$0xff] %vm336, %v1322
    %1389 = vst.msk [vmem:[%s318] sm:$0xff] %vm336, %v1384
    %1391 = vrot.lane.b32.xlu0 %v1313, 96
    %v1392 = vpop.permute.xlu0 %1391
    %1394 = vst.msk [vmem:[#allocation5] sm:$0xff] %vm336, %v1392
    %1396 = vrot.lane.b32.xlu0 %v1375, 96
    %v1397 = vpop.permute.xlu0 %1396
    %1399 = vst.msk [vmem:[%s320] sm:$0xff] %vm336, %v1397
    %v1400 = vld [vmem:[#allocation3] sm:$0xff]
    %v1401 = vld [vmem:[#allocation3 + $0x8] sm:$0xff]
    %v1402 = vld [vmem:[#allocation3 + $0x10] sm:$0xff]
    %v1403 = vld [vmem:[#allocation3 + $0x18] sm:$0xff]
    %v1404 = vld [vmem:[#allocation3 + $0x20] sm:$0xff]
    %v1405 = vld [vmem:[#allocation3 + $0x28] sm:$0xff]
    %v1406 = vld [vmem:[#allocation3 + $0x30] sm:$0xff]
    %v1407 = vld [vmem:[#allocation3 + $0x38] sm:$0xff]
    %v1408 = vpack.c.bf16 %v1401, %v1400
    %v1409 = vpack.c.bf16 %v1403, %v1402
    %v1410 = vpack.c.bf16 %v1405, %v1404
    %v1411 = vpack.c.bf16 %v1407, %v1406
    %v1412 = vld [vmem:[#allocation17] sm:$0xf]
    %v1413 = vld [vmem:[#allocation17 + $0x4] sm:$0xf]
    %v1414 = vld [vmem:[#allocation17 + $0x8] sm:$0xf]
    %v1415 = vld [vmem:[#allocation17 + $0xc] sm:$0xf]
    %v1416 = vld [vmem:[%s9] sm:$0x1]
    %v1418 = vperm.slane %v1416, 0
    %v1424 = vunpack.c.l.b16 %v1412
    %v1425 = vunpack.c.l.b16 %v1413
    %v1426 = vunpack.c.l.b16 %v1414
    %v1427 = vunpack.c.l.b16 %v1415
    %v1428 = vpack.c.b16 %v1425, %v1424
    %v1429 = vpack.c.b16 %v1427, %v1426
    %v1433 = vsel %vm336, %v1408, 0
    %v1436 = vsel %vm336, %v1409, 0
    %v1439 = vsel %vm336, %v1410, 0
    %v1442 = vsel %vm336, %v1411, 0
    %1444 = vmatpush.bf16.msra.mxu0 0
    %1445 = vmatpush.bf16.msra.mxu0 0
    %1446 = vmatpush.bf16.msra.mxu0 0
    %1447 = vmatpush.bf16.msra.mxu0 0
    %1448 = vmatpush.bf16.msra.mxu0 0
    %1449 = vmatpush.bf16.msra.mxu0 0
    %1450 = vmatpush.bf16.msra.mxu0 %v1429
    %1451 = vmatpush.bf16.msra.mxu0 %v1428
    %1452 = vmatmul.bf16.gmra.mxu0 %v1433
    %v1453 = vpop.f32.mrf.mxu0
    %v1454 = vadd.f32 %v1418, %v1453
    %v1455 = vpop.f32.mrf.mxu0
    %v1456 = vadd.f32 %v1418, %v1455
    %1457 = vmatmul.bf16.gmra.mxu0 %v1436
    %v1458 = vpop.f32.mrf.mxu0
    %v1459 = vadd.f32 %v1418, %v1458
    %v1460 = vpop.f32.mrf.mxu0
    %v1461 = vadd.f32 %v1418, %v1460
    %1462 = vmatmul.bf16.gmra.mxu0 %v1439
    %v1463 = vpop.f32.mrf.mxu0
    %v1464 = vadd.f32 %v1418, %v1463
    %v1465 = vpop.f32.mrf.mxu0
    %v1466 = vadd.f32 %v1418, %v1465
    %1467 = vmatmul.bf16.gmra.mxu0 %v1442
    %v1468 = vpop.f32.mrf.mxu0
    %v1469 = vadd.f32 %v1418, %v1468
    %v1470 = vpop.f32.mrf.mxu0
    %v1471 = vadd.f32 %v1418, %v1470
    %1472 = vdwg.mxu0
    %1473 = vst [vmem:[#allocation18] sm:$0xff] %v1454
    %1474 = vst [vmem:[#allocation18 + $0x8] sm:$0xff] %v1456
    %1475 = vst [vmem:[#allocation18 + $0x10] sm:$0xff] %v1459
    %1476 = vst [vmem:[#allocation18 + $0x18] sm:$0xff] %v1461
    %1477 = vst [vmem:[#allocation18 + $0x20] sm:$0xff] %v1464
    %1478 = vst [vmem:[#allocation18 + $0x28] sm:$0xff] %v1466
    %1479 = vst [vmem:[#allocation18 + $0x30] sm:$0xff] %v1469
    %1480 = vst [vmem:[#allocation18 + $0x38] sm:$0xff] %v1471
    // Predicated region
    $region74: #{tpu_custom_call.1} parent=1 // pred_check
      %p1481 = pneg %p150
    $region75: #{tpu_custom_call.1} parent=1 // pred_check_branch
      %1483 = sbr.rel (%p1481) target = $region77
    $region76: #{tpu_custom_call.1} parent=1 // pred_region
      %v1484 = vld [vmem:[#allocation4] sm:$0xff]
      %v1485 = vld [vmem:[#allocation4 + $0x8] sm:$0xff]
      %1486 = vst.msk [vmem:[#allocation19] sm:$0xff] %vm336, %v1484
      %1487 = vst.msk [vmem:[#allocation19 + $0x8] sm:$0xff] %vm336, %v1485
      %v1488 = vld [vmem:[#allocation5] sm:$0xff]
      %v1489 = vld [vmem:[#allocation5 + $0x8] sm:$0xff]
      %1490 = vst.msk [vmem:[#allocation21] sm:$0xff] %vm336, %v1488
      %1491 = vst.msk [vmem:[#allocation21 + $0x8] sm:$0xff] %vm336, %v1489
    $region77: #{tpu_custom_call.1} parent=1 // pred_fallthru
      _
    // Predicated region
    $region78: #{tpu_custom_call.1} parent=1 // pred_check
      _
    $region79: #{tpu_custom_call.1} parent=1 // pred_check_branch
      %1493 = sbr.rel (0) target = $region81
    $region80: #{tpu_custom_call.1} parent=1 // pred_region
      %1495 = vsyncadd [#allocation8], 0
      %s1496 = sshll.u32 [#allocation18], 4
      %s1497 = int_to_ptr.vmem [resolvable:$true] %s1496
      %s1498 = sshll.u32 %s10, 4
      %s1499 = int_to_ptr.hbm [resolvable:$true] %s1498
      %1504 = dma.vmem_to_hbm [thread:$0]  %s1497, 1024, %s1499, [#allocation8], 128, 128, 8
    $region81: #{tpu_custom_call.1} parent=1 // pred_fallthru
      _
    // Predicated region
    $region82: #{tpu_custom_call.1} parent=1 // pred_check
      _
    $region83: #{tpu_custom_call.1} parent=1 // pred_check_branch
      %1506 = sbr.rel (0) target = $region85
    $region84: #{tpu_custom_call.1} parent=1 // pred_region
      %1508 = vsyncadd [#allocation20], 0
      %s1509 = sshll.u32 [#allocation19], 4
      %s1510 = int_to_ptr.vmem [resolvable:$true] %s1509
      %s1511 = sshll.u32 %s11, 4
      %s1512 = int_to_ptr.hbm [resolvable:$true] %s1511
      %1517 = dma.vmem_to_hbm [thread:$0]  %s1510, 256, %s1512, [#allocation20], 128, 128, 8
    $region85: #{tpu_custom_call.1} parent=1 // pred_fallthru
      _
    // Predicated region
    $region86: #{tpu_custom_call.1} parent=1 // pred_check
      _
    $region87: #{tpu_custom_call.1} parent=1 // pred_check_branch
      %1519 = sbr.rel (0) target = $region89
    $region88: #{tpu_custom_call.1} parent=1 // pred_region
      %1521 = vsyncadd [#allocation20], 0
      %s1522 = sshll.u32 [#allocation21], 4
      %s1523 = int_to_ptr.vmem [resolvable:$true] %s1522
      %s1524 = sshll.u32 %s12, 4
      %s1525 = int_to_ptr.hbm [resolvable:$true] %s1524
      %1530 = dma.vmem_to_hbm [thread:$0]  %s1523, 256, %s1525, [#allocation20], 128, 128, 8
    $region89: #{tpu_custom_call.1} parent=1 // pred_fallthru
      _
    // Predicated region
    $region90: #{tpu_custom_call.1} parent=1 // pred_check
      _
    $region91: #{tpu_custom_call.1} parent=1 // pred_check_branch
      %1532 = sbr.rel (0) target = $region93
    $region92: #{tpu_custom_call.1} parent=1 // pred_region
      %1534 = dma.done [#allocation8], 1024
    $region93: #{tpu_custom_call.1} parent=1 // pred_fallthru
      _
    // Predicated region
    $region94: #{tpu_custom_call.1} parent=1 // pred_check
      _
    $region95: #{tpu_custom_call.1} parent=1 // pred_check_branch
      %1536 = sbr.rel (0) target = $region97
    $region96: #{tpu_custom_call.1} parent=1 // pred_region
      %1538 = dma.done [#allocation20], 256
    $region97: #{tpu_custom_call.1} parent=1 // pred_fallthru
      _
    // Predicated region
    $region98: #{tpu_custom_call.1} parent=1 // pred_check
      _
    $region99: #{tpu_custom_call.1} parent=1 // pred_check_branch
      %1540 = sbr.rel (0) target = $region101
    $region100: #{tpu_custom_call.1} parent=1 // pred_region
      %1542 = dma.done [#allocation20], 256
    $region101: #{tpu_custom_call.1} parent=1 // pred_fallthru
      _
    %1543 = vsyncpa [#allocation7], 1
    %1544 = vsyncpa [#allocation10], 1
    %1545 = vsyncpa [#allocation13], 1
    %1546 = vsyncpa [#allocation16], 1
    %1547 = vsyncpa [#allocation8], 1
    %1548 = vsyncpa [#allocation20], 1

</llo_original>
